<compile_context>
chip_gen: v7x
topology: tpu7x:2x2x1
jax: 0.10.0
libtpu: 0.0.40
codegen_flags: <defaults>
</compile_context>

<pallas_src>
import functools

import jax
import jax.numpy as jnp
from jax.experimental import pallas as pl
from jax.experimental.pallas import tpu as pltpu


def _self_attention_kernel(x_ref, wqkv_ref, wo_ref, bo_ref, o_ref,
                           *, batch, seq, num_heads):
    """Single grid step processes every token of every batch element.

    x_ref:    (B*S, E)   input tokens (batch folded into sublanes)
    wqkv_ref: (E, 3E)    fused qkv weights, columns ordered (qkv, head, d),
                         1/sqrt(head_dim) already folded into the q columns
    wo_ref:   (E, E)     out_proj weight, already transposed (ctx @ wo)
    bo_ref:   (1, E)     out_proj bias
    o_ref:    (B*S, E)   output
    """
    B, S, H = batch, seq, num_heads
    BS, E = x_ref.shape
    D = E // H

    x = x_ref[...]                          # native dtype (bf16-ready)
    in_dt = x.dtype

    # ---- one fused QKV projection: (B*S, E) @ (E, 3E), f32 accumulation ----
    qkv = jnp.dot(x, wqkv_ref[...], preferred_element_type=jnp.float32)

    q = qkv[:, 0 * E:1 * E]                 # scale D**-0.5 pre-folded into wq
    k = qkv[:, 1 * E:2 * E]
    v = qkv[:, 2 * E:3 * E]

    # ---- attention: B*H tiny independent problems, statically unrolled ----
    # (A head-batched dot_general unrolls to the same per-head matmuls on the
    #  MXU, so the static loop costs nothing extra and avoids small-shape
    #  lane->sublane relayouts.)
    ctx_rows = []
    for b in range(B):
        rows = slice(b * S, (b + 1) * S)
        head_ctx = []
        for h in range(H):
            cols = slice(h * D, (h + 1) * D)
            qh = q[rows, cols].astype(in_dt)            # (S, D)
            kh = k[rows, cols].astype(in_dt)            # (S, D)
            vh = v[rows, cols].astype(in_dt)            # (S, D)

            s = jnp.dot(qh, kh.T, preferred_element_type=jnp.float32)  # (S, S)
            s = s - jnp.max(s, axis=-1, keepdims=True)
            p = jnp.exp(s)                              # softmax kept in f32
            denom = jnp.sum(p, axis=-1, keepdims=True)
            p = p * pl.reciprocal(denom, approx=True)   # divide on the EUP slot
            # TODO(synk): attn_dropout / proj_dropout are identity (eval mode).

            head_ctx.append(jnp.dot(p.astype(in_dt), vh,
                                    preferred_element_type=jnp.float32))
        # lane concat == the 'b h l d -> b l (h d)' relayout, d minor
        ctx_rows.append(jnp.concatenate(head_ctx, axis=-1))    # (S, E)
    ctx = jnp.concatenate(ctx_rows, axis=0)                    # (B*S, E)

    # ---- one fused output projection + bias ----
    out = jnp.dot(ctx.astype(in_dt), wo_ref[...],
                  preferred_element_type=jnp.float32)
    out = out + bo_ref[...].astype(jnp.float32)
    o_ref[...] = out.astype(o_ref.dtype)


def prepare_self_attention_params(w_qkv, w_out, b_out, num_heads):
    """One-time weight prep (hoisted out of the per-call path).

    w_qkv: (3E, E) torch nn.Linear weight (bias=False), output rows ordered
           (qkv, head, head_dim) per Rearrange('b h (qkv l d) -> qkv b l h d').
    w_out: (E, E)  out_proj.weight;  b_out: (E,) out_proj.bias.
    """
    E = w_out.shape[0]
    D = E // num_heads
    scale = D ** (-0.5)
    # Fused (E, 3E) weight for x @ W; fold 1/sqrt(head_dim) into the q columns.
    wqkv_fused = jnp.concatenate(
        [w_qkv[0 * E:1 * E].T * scale,
         w_qkv[1 * E:2 * E].T,
         w_qkv[2 * E:3 * E].T], axis=1)
    wo = w_out.T                    # ctx @ wo == ctx @ w_out.T
    bo = b_out.reshape(1, E)
    return wqkv_fused, wo, bo


def self_attention_pallas(x, wqkv_fused, wo, bo, *, num_heads):
    """x: (B, S, E); weights from prepare_self_attention_params."""
    B, S, E = x.shape
    x2 = x.reshape(B * S, E)        # fold batch into the sublane (token) dim

    kernel = functools.partial(_self_attention_kernel,
                               batch=B, seq=S, num_heads=num_heads)
    out2 = pl.pallas_call(
        kernel,
        out_shape=jax.ShapeDtypeStruct((B * S, E), x.dtype),
        grid=(1,),                  # single step: whole problem per invocation
        in_specs=[
            pl.BlockSpec((B * S, E), lambda i: (0, 0)),      # x tokens
            pl.BlockSpec((E, 3 * E), lambda i: (0, 0)),      # fused qkv weight
            pl.BlockSpec((E, E), lambda i: (0, 0)),          # out_proj weight
            pl.BlockSpec((1, E), lambda i: (0, 0)),          # out_proj bias
        ],
        out_specs=pl.BlockSpec((B * S, E), lambda i: (0, 0)),
        compiler_params=pltpu.CompilerParams(
            dimension_semantics=("arbitrary",)),
    )(x2, wqkv_fused, wo, bo)
    return out2.reshape(B, S, E)


def self_attention_ref(x, w_qkv, w_out, b_out, num_heads):
    """Pure-JAX reference mirroring the PyTorch forward (eval mode), computed
    directly from the torch-layout weights so the wrapper's fusion/permutation
    and scale folding are actually exercised by the check."""
    B, S, E = x.shape
    D = E // num_heads
    qkv = x @ w_qkv.T                                              # (B, S, 3E)
    # Rearrange 'b h (qkv l d) -> qkv b l h d'
    qkv = qkv.reshape(B, S, 3, num_heads, D).transpose(2, 0, 3, 1, 4)
    q, k, v = qkv[0], qkv[1], qkv[2]                               # (B, H, S, D)
    att = jnp.einsum('blxd,blyd->blxy', q, k) * D ** (-0.5)
    att = jax.nn.softmax(att, axis=-1)
    ctx = jnp.einsum('blxy,blyd->blxd', att, v)                    # (B, H, S, D)
    ctx = ctx.transpose(0, 2, 1, 3).reshape(B, S, E)               # 'b h l d -> b l (h d)'
    return ctx @ w_out.T + b_out


if __name__ == "__main__":
    # Small shapes consistent with the module: embed_dim=32, num_heads=4.
    B, S, E, H = 2, 8, 32, 4

    key = jax.random.PRNGKey(0)
    kx, kqkv, kwo, kbo = jax.random.split(key, 4)

    x = jax.random.normal(kx, (B, S, E), dtype=jnp.float32)

    # nn.Linear(embed_dim, 3*embed_dim, bias=False): weight (3E, E)
    w_qkv = jax.random.normal(kqkv, (3 * E, E), dtype=jnp.float32) * 0.05
    # nn.Linear(embed_dim, embed_dim): weight (E, E) + bias (E,)
    w_out = jax.random.normal(kwo, (E, E), dtype=jnp.float32) * 0.05
    b_out = jax.random.normal(kbo, (E,), dtype=jnp.float32) * 0.01

    # One-time weight prep (outside the per-call path).
    params = prepare_self_attention_params(w_qkv, w_out, b_out, H)

    fn = jax.jit(functools.partial(self_attention_pallas, num_heads=H))
    out = fn(x, *params)
    out = jax.block_until_ready(out)

    ref = self_attention_ref(x, w_qkv, w_out, b_out, num_heads=H)
    assert out.shape == (B, S, E)
    # Slightly loosened tolerance: approx EUP reciprocal in the softmax
    # normalization; a layout/permutation bug would show errors ~1e-1.
    assert jnp.allclose(out, ref, atol=2e-3, rtol=2e-3), "mismatch vs reference"

    print("KERNEL_OK")
</pallas_src>

<mosaic_0001>
module attributes {stable_mosaic.version = 11 : i64} {
  func.func @_self_attention_kernel(%arg0: i32, %arg1: memref<16x32xf32, #tpu.memory_space<vmem>>, %arg2: memref<32x96xf32, #tpu.memory_space<vmem>>, %arg3: memref<32x32xf32, #tpu.memory_space<vmem>>, %arg4: memref<1x32xf32, #tpu.memory_space<vmem>>, %arg5: memref<16x32xf32, #tpu.memory_space<vmem>>) attributes {dimension_semantics = [#tpu.dimension_semantics<arbitrary>], iteration_bounds = array<i64: 1>, scalar_prefetch = 0 : i64, scratch_operands = 0 : i64, tpu.core_type = #tpu.core_type<tc>, window_params = [{pipeline_mode = #tpu.pipeline_mode<synchronous>, transform_indices = @transform_0, window_bounds = array<i64: 16, 32>}, {pipeline_mode = #tpu.pipeline_mode<synchronous>, transform_indices = @transform_1, window_bounds = array<i64: 32, 96>}, {pipeline_mode = #tpu.pipeline_mode<synchronous>, transform_indices = @transform_2, window_bounds = array<i64: 32, 32>}, {pipeline_mode = #tpu.pipeline_mode<synchronous>, transform_indices = @transform_3, window_bounds = array<i64: 1, 32>}, {pipeline_mode = #tpu.pipeline_mode<synchronous>, transform_indices = @transform_4, window_bounds = array<i64: 16, 32>}]} {
    %c0 = arith.constant 0 : index
    %c0_0 = arith.constant 0 : index
    %0 = vector.load %arg1[%c0, %c0_0] : memref<16x32xf32, #tpu.memory_space<vmem>>, vector<16x32xf32>
    %c0_1 = arith.constant 0 : index
    %c0_2 = arith.constant 0 : index
    %1 = vector.load %arg2[%c0_1, %c0_2] : memref<32x96xf32, #tpu.memory_space<vmem>>, vector<32x96xf32>
    %cst = arith.constant dense<0.000000e+00> : vector<16x96xf32>
    %2 = tpu.matmul %0, %1, %cst {dimension_numbers = #tpu.dot_dimension_numbers<[1], [0], [0], [1], [0, 0, 1, 1], [], []>} : vector<16x32xf32>, vector<32x96xf32>, vector<16x96xf32> -> vector<16x96xf32>
    %3 = vector.extract_strided_slice %2 {offsets = [0, 0], sizes = [16, 32], strides = [1, 1]} : vector<16x96xf32> to vector<16x32xf32>
    %4 = vector.extract_strided_slice %2 {offsets = [0, 32], sizes = [16, 32], strides = [1, 1]} : vector<16x96xf32> to vector<16x32xf32>
    %5 = vector.extract_strided_slice %2 {offsets = [0, 64], sizes = [16, 32], strides = [1, 1]} : vector<16x96xf32> to vector<16x32xf32>
    %6 = vector.extract_strided_slice %3 {offsets = [0, 0], sizes = [8, 8], strides = [1, 1]} : vector<16x32xf32> to vector<8x8xf32>
    %7 = vector.extract_strided_slice %4 {offsets = [0, 0], sizes = [8, 8], strides = [1, 1]} : vector<16x32xf32> to vector<8x8xf32>
    %8 = vector.extract_strided_slice %5 {offsets = [0, 0], sizes = [8, 8], strides = [1, 1]} : vector<16x32xf32> to vector<8x8xf32>
    %9 = tpu.transpose %7, [1, 0] : vector<8x8xf32> -> vector<8x8xf32>
    %cst_3 = arith.constant dense<0.000000e+00> : vector<8x8xf32>
    %10 = tpu.matmul %6, %9, %cst_3 {dimension_numbers = #tpu.dot_dimension_numbers<[1], [0], [0], [1], [0, 0, 1, 1], [], []>} : vector<8x8xf32>, vector<8x8xf32>, vector<8x8xf32> -> vector<8x8xf32>
    %cst_4 = arith.constant dense<0xFF800000> : vector<8xf32>
    %11 = vector.multi_reduction <maximumf>, %10, %cst_4 [1] : vector<8x8xf32> to vector<8xf32>
    %12 = vector.shape_cast %11 : vector<8xf32> to vector<8x1xf32>
    %13 = vector.broadcast %12 : vector<8x1xf32> to vector<8x8xf32>
    %14 = arith.subf %10, %13 : vector<8x8xf32>
    %15 = math.exp %14 : vector<8x8xf32>
    %cst_5 = arith.constant dense<0.000000e+00> : vector<8xf32>
    %16 = vector.multi_reduction <add>, %15, %cst_5 [1] : vector<8x8xf32> to vector<8xf32>
    %17 = vector.shape_cast %16 : vector<8xf32> to vector<8x1xf32>
    %18 = tpu.reciprocal %17 {approx = true} : vector<8x1xf32> -> vector<8x1xf32>
    %19 = vector.broadcast %18 : vector<8x1xf32> to vector<8x8xf32>
    %20 = arith.mulf %15, %19 : vector<8x8xf32>
    %cst_6 = arith.constant dense<0.000000e+00> : vector<8x8xf32>
    %21 = tpu.matmul %20, %8, %cst_6 {dimension_numbers = #tpu.dot_dimension_numbers<[1], [0], [0], [1], [0, 0, 1, 1], [], []>} : vector<8x8xf32>, vector<8x8xf32>, vector<8x8xf32> -> vector<8x8xf32>
    %22 = vector.extract_strided_slice %3 {offsets = [0, 8], sizes = [8, 8], strides = [1, 1]} : vector<16x32xf32> to vector<8x8xf32>
    %23 = vector.extract_strided_slice %4 {offsets = [0, 8], sizes = [8, 8], strides = [1, 1]} : vector<16x32xf32> to vector<8x8xf32>
    %24 = vector.extract_strided_slice %5 {offsets = [0, 8], sizes = [8, 8], strides = [1, 1]} : vector<16x32xf32> to vector<8x8xf32>
    %25 = tpu.transpose %23, [1, 0] : vector<8x8xf32> -> vector<8x8xf32>
    %cst_7 = arith.constant dense<0.000000e+00> : vector<8x8xf32>
    %26 = tpu.matmul %22, %25, %cst_7 {dimension_numbers = #tpu.dot_dimension_numbers<[1], [0], [0], [1], [0, 0, 1, 1], [], []>} : vector<8x8xf32>, vector<8x8xf32>, vector<8x8xf32> -> vector<8x8xf32>
    %cst_8 = arith.constant dense<0xFF800000> : vector<8xf32>
    %27 = vector.multi_reduction <maximumf>, %26, %cst_8 [1] : vector<8x8xf32> to vector<8xf32>
    %28 = vector.shape_cast %27 : vector<8xf32> to vector<8x1xf32>
    %29 = vector.broadcast %28 : vector<8x1xf32> to vector<8x8xf32>
    %30 = arith.subf %26, %29 : vector<8x8xf32>
    %31 = math.exp %30 : vector<8x8xf32>
    %cst_9 = arith.constant dense<0.000000e+00> : vector<8xf32>
    %32 = vector.multi_reduction <add>, %31, %cst_9 [1] : vector<8x8xf32> to vector<8xf32>
    %33 = vector.shape_cast %32 : vector<8xf32> to vector<8x1xf32>
    %34 = tpu.reciprocal %33 {approx = true} : vector<8x1xf32> -> vector<8x1xf32>
    %35 = vector.broadcast %34 : vector<8x1xf32> to vector<8x8xf32>
    %36 = arith.mulf %31, %35 : vector<8x8xf32>
    %cst_10 = arith.constant dense<0.000000e+00> : vector<8x8xf32>
    %37 = tpu.matmul %36, %24, %cst_10 {dimension_numbers = #tpu.dot_dimension_numbers<[1], [0], [0], [1], [0, 0, 1, 1], [], []>} : vector<8x8xf32>, vector<8x8xf32>, vector<8x8xf32> -> vector<8x8xf32>
    %38 = vector.extract_strided_slice %3 {offsets = [0, 16], sizes = [8, 8], strides = [1, 1]} : vector<16x32xf32> to vector<8x8xf32>
    %39 = vector.extract_strided_slice %4 {offsets = [0, 16], sizes = [8, 8], strides = [1, 1]} : vector<16x32xf32> to vector<8x8xf32>
    %40 = vector.extract_strided_slice %5 {offsets = [0, 16], sizes = [8, 8], strides = [1, 1]} : vector<16x32xf32> to vector<8x8xf32>
    %41 = tpu.transpose %39, [1, 0] : vector<8x8xf32> -> vector<8x8xf32>
    %cst_11 = arith.constant dense<0.000000e+00> : vector<8x8xf32>
    %42 = tpu.matmul %38, %41, %cst_11 {dimension_numbers = #tpu.dot_dimension_numbers<[1], [0], [0], [1], [0, 0, 1, 1], [], []>} : vector<8x8xf32>, vector<8x8xf32>, vector<8x8xf32> -> vector<8x8xf32>
    %cst_12 = arith.constant dense<0xFF800000> : vector<8xf32>
    %43 = vector.multi_reduction <maximumf>, %42, %cst_12 [1] : vector<8x8xf32> to vector<8xf32>
    %44 = vector.shape_cast %43 : vector<8xf32> to vector<8x1xf32>
    %45 = vector.broadcast %44 : vector<8x1xf32> to vector<8x8xf32>
    %46 = arith.subf %42, %45 : vector<8x8xf32>
    %47 = math.exp %46 : vector<8x8xf32>
    %cst_13 = arith.constant dense<0.000000e+00> : vector<8xf32>
    %48 = vector.multi_reduction <add>, %47, %cst_13 [1] : vector<8x8xf32> to vector<8xf32>
    %49 = vector.shape_cast %48 : vector<8xf32> to vector<8x1xf32>
    %50 = tpu.reciprocal %49 {approx = true} : vector<8x1xf32> -> vector<8x1xf32>
    %51 = vector.broadcast %50 : vector<8x1xf32> to vector<8x8xf32>
    %52 = arith.mulf %47, %51 : vector<8x8xf32>
    %cst_14 = arith.constant dense<0.000000e+00> : vector<8x8xf32>
    %53 = tpu.matmul %52, %40, %cst_14 {dimension_numbers = #tpu.dot_dimension_numbers<[1], [0], [0], [1], [0, 0, 1, 1], [], []>} : vector<8x8xf32>, vector<8x8xf32>, vector<8x8xf32> -> vector<8x8xf32>
    %54 = vector.extract_strided_slice %3 {offsets = [0, 24], sizes = [8, 8], strides = [1, 1]} : vector<16x32xf32> to vector<8x8xf32>
    %55 = vector.extract_strided_slice %4 {offsets = [0, 24], sizes = [8, 8], strides = [1, 1]} : vector<16x32xf32> to vector<8x8xf32>
    %56 = vector.extract_strided_slice %5 {offsets = [0, 24], sizes = [8, 8], strides = [1, 1]} : vector<16x32xf32> to vector<8x8xf32>
    %57 = tpu.transpose %55, [1, 0] : vector<8x8xf32> -> vector<8x8xf32>
    %cst_15 = arith.constant dense<0.000000e+00> : vector<8x8xf32>
    %58 = tpu.matmul %54, %57, %cst_15 {dimension_numbers = #tpu.dot_dimension_numbers<[1], [0], [0], [1], [0, 0, 1, 1], [], []>} : vector<8x8xf32>, vector<8x8xf32>, vector<8x8xf32> -> vector<8x8xf32>
    %cst_16 = arith.constant dense<0xFF800000> : vector<8xf32>
    %59 = vector.multi_reduction <maximumf>, %58, %cst_16 [1] : vector<8x8xf32> to vector<8xf32>
    %60 = vector.shape_cast %59 : vector<8xf32> to vector<8x1xf32>
    %61 = vector.broadcast %60 : vector<8x1xf32> to vector<8x8xf32>
    %62 = arith.subf %58, %61 : vector<8x8xf32>
    %63 = math.exp %62 : vector<8x8xf32>
    %cst_17 = arith.constant dense<0.000000e+00> : vector<8xf32>
    %64 = vector.multi_reduction <add>, %63, %cst_17 [1] : vector<8x8xf32> to vector<8xf32>
    %65 = vector.shape_cast %64 : vector<8xf32> to vector<8x1xf32>
    %66 = tpu.reciprocal %65 {approx = true} : vector<8x1xf32> -> vector<8x1xf32>
    %67 = vector.broadcast %66 : vector<8x1xf32> to vector<8x8xf32>
    %68 = arith.mulf %63, %67 : vector<8x8xf32>
    %cst_18 = arith.constant dense<0.000000e+00> : vector<8x8xf32>
    %69 = tpu.matmul %68, %56, %cst_18 {dimension_numbers = #tpu.dot_dimension_numbers<[1], [0], [0], [1], [0, 0, 1, 1], [], []>} : vector<8x8xf32>, vector<8x8xf32>, vector<8x8xf32> -> vector<8x8xf32>
    %70 = tpu.concatenate %21, %37, %53, %69 in 1 : vector<8x8xf32>, vector<8x8xf32>, vector<8x8xf32>, vector<8x8xf32> -> vector<8x32xf32>
    %71 = vector.extract_strided_slice %3 {offsets = [8, 0], sizes = [8, 8], strides = [1, 1]} : vector<16x32xf32> to vector<8x8xf32>
    %72 = vector.extract_strided_slice %4 {offsets = [8, 0], sizes = [8, 8], strides = [1, 1]} : vector<16x32xf32> to vector<8x8xf32>
    %73 = vector.extract_strided_slice %5 {offsets = [8, 0], sizes = [8, 8], strides = [1, 1]} : vector<16x32xf32> to vector<8x8xf32>
    %74 = tpu.transpose %72, [1, 0] : vector<8x8xf32> -> vector<8x8xf32>
    %cst_19 = arith.constant dense<0.000000e+00> : vector<8x8xf32>
    %75 = tpu.matmul %71, %74, %cst_19 {dimension_numbers = #tpu.dot_dimension_numbers<[1], [0], [0], [1], [0, 0, 1, 1], [], []>} : vector<8x8xf32>, vector<8x8xf32>, vector<8x8xf32> -> vector<8x8xf32>
    %cst_20 = arith.constant dense<0xFF800000> : vector<8xf32>
    %76 = vector.multi_reduction <maximumf>, %75, %cst_20 [1] : vector<8x8xf32> to vector<8xf32>
    %77 = vector.shape_cast %76 : vector<8xf32> to vector<8x1xf32>
    %78 = vector.broadcast %77 : vector<8x1xf32> to vector<8x8xf32>
    %79 = arith.subf %75, %78 : vector<8x8xf32>
    %80 = math.exp %79 : vector<8x8xf32>
    %cst_21 = arith.constant dense<0.000000e+00> : vector<8xf32>
    %81 = vector.multi_reduction <add>, %80, %cst_21 [1] : vector<8x8xf32> to vector<8xf32>
    %82 = vector.shape_cast %81 : vector<8xf32> to vector<8x1xf32>
    %83 = tpu.reciprocal %82 {approx = true} : vector<8x1xf32> -> vector<8x1xf32>
    %84 = vector.broadcast %83 : vector<8x1xf32> to vector<8x8xf32>
    %85 = arith.mulf %80, %84 : vector<8x8xf32>
    %cst_22 = arith.constant dense<0.000000e+00> : vector<8x8xf32>
    %86 = tpu.matmul %85, %73, %cst_22 {dimension_numbers = #tpu.dot_dimension_numbers<[1], [0], [0], [1], [0, 0, 1, 1], [], []>} : vector<8x8xf32>, vector<8x8xf32>, vector<8x8xf32> -> vector<8x8xf32>
    %87 = vector.extract_strided_slice %3 {offsets = [8, 8], sizes = [8, 8], strides = [1, 1]} : vector<16x32xf32> to vector<8x8xf32>
    %88 = vector.extract_strided_slice %4 {offsets = [8, 8], sizes = [8, 8], strides = [1, 1]} : vector<16x32xf32> to vector<8x8xf32>
    %89 = vector.extract_strided_slice %5 {offsets = [8, 8], sizes = [8, 8], strides = [1, 1]} : vector<16x32xf32> to vector<8x8xf32>
    %90 = tpu.transpose %88, [1, 0] : vector<8x8xf32> -> vector<8x8xf32>
    %cst_23 = arith.constant dense<0.000000e+00> : vector<8x8xf32>
    %91 = tpu.matmul %87, %90, %cst_23 {dimension_numbers = #tpu.dot_dimension_numbers<[1], [0], [0], [1], [0, 0, 1, 1], [], []>} : vector<8x8xf32>, vector<8x8xf32>, vector<8x8xf32> -> vector<8x8xf32>
    %cst_24 = arith.constant dense<0xFF800000> : vector<8xf32>
    %92 = vector.multi_reduction <maximumf>, %91, %cst_24 [1] : vector<8x8xf32> to vector<8xf32>
    %93 = vector.shape_cast %92 : vector<8xf32> to vector<8x1xf32>
    %94 = vector.broadcast %93 : vector<8x1xf32> to vector<8x8xf32>
    %95 = arith.subf %91, %94 : vector<8x8xf32>
    %96 = math.exp %95 : vector<8x8xf32>
    %cst_25 = arith.constant dense<0.000000e+00> : vector<8xf32>
    %97 = vector.multi_reduction <add>, %96, %cst_25 [1] : vector<8x8xf32> to vector<8xf32>
    %98 = vector.shape_cast %97 : vector<8xf32> to vector<8x1xf32>
    %99 = tpu.reciprocal %98 {approx = true} : vector<8x1xf32> -> vector<8x1xf32>
    %100 = vector.broadcast %99 : vector<8x1xf32> to vector<8x8xf32>
    %101 = arith.mulf %96, %100 : vector<8x8xf32>
    %cst_26 = arith.constant dense<0.000000e+00> : vector<8x8xf32>
    %102 = tpu.matmul %101, %89, %cst_26 {dimension_numbers = #tpu.dot_dimension_numbers<[1], [0], [0], [1], [0, 0, 1, 1], [], []>} : vector<8x8xf32>, vector<8x8xf32>, vector<8x8xf32> -> vector<8x8xf32>
    %103 = vector.extract_strided_slice %3 {offsets = [8, 16], sizes = [8, 8], strides = [1, 1]} : vector<16x32xf32> to vector<8x8xf32>
    %104 = vector.extract_strided_slice %4 {offsets = [8, 16], sizes = [8, 8], strides = [1, 1]} : vector<16x32xf32> to vector<8x8xf32>
    %105 = vector.extract_strided_slice %5 {offsets = [8, 16], sizes = [8, 8], strides = [1, 1]} : vector<16x32xf32> to vector<8x8xf32>
    %106 = tpu.transpose %104, [1, 0] : vector<8x8xf32> -> vector<8x8xf32>
    %cst_27 = arith.constant dense<0.000000e+00> : vector<8x8xf32>
    %107 = tpu.matmul %103, %106, %cst_27 {dimension_numbers = #tpu.dot_dimension_numbers<[1], [0], [0], [1], [0, 0, 1, 1], [], []>} : vector<8x8xf32>, vector<8x8xf32>, vector<8x8xf32> -> vector<8x8xf32>
    %cst_28 = arith.constant dense<0xFF800000> : vector<8xf32>
    %108 = vector.multi_reduction <maximumf>, %107, %cst_28 [1] : vector<8x8xf32> to vector<8xf32>
    %109 = vector.shape_cast %108 : vector<8xf32> to vector<8x1xf32>
    %110 = vector.broadcast %109 : vector<8x1xf32> to vector<8x8xf32>
    %111 = arith.subf %107, %110 : vector<8x8xf32>
    %112 = math.exp %111 : vector<8x8xf32>
    %cst_29 = arith.constant dense<0.000000e+00> : vector<8xf32>
    %113 = vector.multi_reduction <add>, %112, %cst_29 [1] : vector<8x8xf32> to vector<8xf32>
    %114 = vector.shape_cast %113 : vector<8xf32> to vector<8x1xf32>
    %115 = tpu.reciprocal %114 {approx = true} : vector<8x1xf32> -> vector<8x1xf32>
    %116 = vector.broadcast %115 : vector<8x1xf32> to vector<8x8xf32>
    %117 = arith.mulf %112, %116 : vector<8x8xf32>
    %cst_30 = arith.constant dense<0.000000e+00> : vector<8x8xf32>
    %118 = tpu.matmul %117, %105, %cst_30 {dimension_numbers = #tpu.dot_dimension_numbers<[1], [0], [0], [1], [0, 0, 1, 1], [], []>} : vector<8x8xf32>, vector<8x8xf32>, vector<8x8xf32> -> vector<8x8xf32>
    %119 = vector.extract_strided_slice %3 {offsets = [8, 24], sizes = [8, 8], strides = [1, 1]} : vector<16x32xf32> to vector<8x8xf32>
    %120 = vector.extract_strided_slice %4 {offsets = [8, 24], sizes = [8, 8], strides = [1, 1]} : vector<16x32xf32> to vector<8x8xf32>
    %121 = vector.extract_strided_slice %5 {offsets = [8, 24], sizes = [8, 8], strides = [1, 1]} : vector<16x32xf32> to vector<8x8xf32>
    %122 = tpu.transpose %120, [1, 0] : vector<8x8xf32> -> vector<8x8xf32>
    %cst_31 = arith.constant dense<0.000000e+00> : vector<8x8xf32>
    %123 = tpu.matmul %119, %122, %cst_31 {dimension_numbers = #tpu.dot_dimension_numbers<[1], [0], [0], [1], [0, 0, 1, 1], [], []>} : vector<8x8xf32>, vector<8x8xf32>, vector<8x8xf32> -> vector<8x8xf32>
    %cst_32 = arith.constant dense<0xFF800000> : vector<8xf32>
    %124 = vector.multi_reduction <maximumf>, %123, %cst_32 [1] : vector<8x8xf32> to vector<8xf32>
    %125 = vector.shape_cast %124 : vector<8xf32> to vector<8x1xf32>
    %126 = vector.broadcast %125 : vector<8x1xf32> to vector<8x8xf32>
    %127 = arith.subf %123, %126 : vector<8x8xf32>
    %128 = math.exp %127 : vector<8x8xf32>
    %cst_33 = arith.constant dense<0.000000e+00> : vector<8xf32>
    %129 = vector.multi_reduction <add>, %128, %cst_33 [1] : vector<8x8xf32> to vector<8xf32>
    %130 = vector.shape_cast %129 : vector<8xf32> to vector<8x1xf32>
    %131 = tpu.reciprocal %130 {approx = true} : vector<8x1xf32> -> vector<8x1xf32>
    %132 = vector.broadcast %131 : vector<8x1xf32> to vector<8x8xf32>
    %133 = arith.mulf %128, %132 : vector<8x8xf32>
    %cst_34 = arith.constant dense<0.000000e+00> : vector<8x8xf32>
    %134 = tpu.matmul %133, %121, %cst_34 {dimension_numbers = #tpu.dot_dimension_numbers<[1], [0], [0], [1], [0, 0, 1, 1], [], []>} : vector<8x8xf32>, vector<8x8xf32>, vector<8x8xf32> -> vector<8x8xf32>
    %135 = tpu.concatenate %86, %102, %118, %134 in 1 : vector<8x8xf32>, vector<8x8xf32>, vector<8x8xf32>, vector<8x8xf32> -> vector<8x32xf32>
    %136 = tpu.concatenate %70, %135 in 0 : vector<8x32xf32>, vector<8x32xf32> -> vector<16x32xf32>
    %c0_35 = arith.constant 0 : index
    %c0_36 = arith.constant 0 : index
    %137 = vector.load %arg3[%c0_35, %c0_36] : memref<32x32xf32, #tpu.memory_space<vmem>>, vector<32x32xf32>
    %cst_37 = arith.constant dense<0.000000e+00> : vector<16x32xf32>
    %138 = tpu.matmul %136, %137, %cst_37 {dimension_numbers = #tpu.dot_dimension_numbers<[1], [0], [0], [1], [0, 0, 1, 1], [], []>} : vector<16x32xf32>, vector<32x32xf32>, vector<16x32xf32> -> vector<16x32xf32>
    %c0_38 = arith.constant 0 : index
    %c0_39 = arith.constant 0 : index
    %139 = vector.load %arg4[%c0_38, %c0_39] : memref<1x32xf32, #tpu.memory_space<vmem>>, vector<1x32xf32>
    %140 = vector.broadcast %139 : vector<1x32xf32> to vector<16x32xf32>
    %141 = arith.addf %138, %140 : vector<16x32xf32>
    %c0_40 = arith.constant 0 : index
    %c0_41 = arith.constant 0 : index
    %142 = vector.load %arg5[%c0_40, %c0_41] : memref<16x32xf32, #tpu.memory_space<vmem>>, vector<16x32xf32>
    tpu.vector_store %arg5[%c0_40, %c0_41], %141 {strides = array<i32>} : memref<16x32xf32, #tpu.memory_space<vmem>>, vector<16x32xf32>,
    return
  }
  func.func @transform_0(%arg0: i32) -> (i32, i32) {
    %c0_i32 = arith.constant 0 : i32
    %c0_i32_0 = arith.constant 0 : i32
    %c0_i32_1 = arith.constant 0 : i32
    return %c0_i32, %c0_i32_0 : i32, i32
  }
  func.func @transform_1(%arg0: i32) -> (i32, i32) {
    %c0_i32 = arith.constant 0 : i32
    %c0_i32_0 = arith.constant 0 : i32
    %c0_i32_1 = arith.constant 0 : i32
    return %c0_i32, %c0_i32_0 : i32, i32
  }
  func.func @transform_2(%arg0: i32) -> (i32, i32) {
    %c0_i32 = arith.constant 0 : i32
    %c0_i32_0 = arith.constant 0 : i32
    %c0_i32_1 = arith.constant 0 : i32
    return %c0_i32, %c0_i32_0 : i32, i32
  }
  func.func @transform_3(%arg0: i32) -> (i32, i32) {
    %c0_i32 = arith.constant 0 : i32
    %c0_i32_0 = arith.constant 0 : i32
    %c0_i32_1 = arith.constant 0 : i32
    return %c0_i32, %c0_i32_0 : i32, i32
  }
  func.func @transform_4(%arg0: i32) -> (i32, i32) {
    %c0_i32 = arith.constant 0 : i32
    %c0_i32_0 = arith.constant 0 : i32
    %c0_i32_1 = arith.constant 0 : i32
    return %c0_i32, %c0_i32_0 : i32, i32
  }
}

</mosaic_0001>

<llo_original>
// kernel: self_attention_pallas.1
$region0: #{self_attention_pallas.1}
  #allocation0 [shape = 'u32[]', space=smem, size = 0x4, offset = 0x4, fixed_abs, tag = 'smem constant byte address 0x4 - core index']
  #allocation1 [shape = 'u32[144,128]{1,0:T(1,128)}', space=vmem, size = 0x12000, scoped, tag = 'internal scratch']
  %s0 = inlined_call_operand.hbm [shape: f32[16,32], index: 0, kind: input, shape index: {}]
  %s1 = inlined_call_operand.hbm [shape: f32[32,96], index: 1, kind: input, shape index: {}]
  %s2 = inlined_call_operand.hbm [shape: f32[32,32], index: 2, kind: input, shape index: {}]
  %s3 = inlined_call_operand.vmem [shape: f32[1,32], index: 3, kind: input, shape index: {}]
  %s4 = inlined_call_operand.hbm [shape: f32[16,32], index: 4, kind: output, shape index: {}]
  %s5 = sld [smem:[#allocation0]]
  $region38: #{self_attention_pallas.1} parent=0
    _
  %s7 = ssub.s32 1, %s5
  %s8 = scalar_select 0, %s7, %s5
  $region1: #{self_attention_pallas.1} parent=0
    #allocation2 [shape = 'u8[8192]{0}', space=vmem, size = 0x2000, scoped, tag = 'input window, operand 0, single buffered']
    #allocation3 [shape = 's32[1]{0}', space=sflag, size = 0x4, scoped, tag = 'scoped memory for self_attention_pallas.1']
    #allocation4 [shape = 's32[1]{0}', space=sflag, size = 0x4, scoped, tag = 'scoped memory for self_attention_pallas.1']
    #allocation5 [shape = 'u8[16384]{0}', space=vmem, size = 0x4000, scoped, tag = 'input window, operand 1, single buffered']
    #allocation6 [shape = 's32[1]{0}', space=sflag, size = 0x4, scoped, tag = 'scoped memory for self_attention_pallas.1']
    #allocation7 [shape = 'u8[16384]{0}', space=vmem, size = 0x4000, scoped, tag = 'input window, operand 2, single buffered']
    #allocation8 [shape = 'u8[8192]{0}', space=vmem, size = 0x2000, scoped, tag = 'output window, operand 0, single buffered']
    %9 = vsyncpa [#allocation3], 0
    %10 = vsyncpa [#allocation6], 0
    %11 = vsyncpa [#allocation4], 0
    // Predicated region
    $region2: #{self_attention_pallas.1} parent=1 // pred_check
      _
    $region3: #{self_attention_pallas.1} parent=1 // pred_check_branch
      %13 = sbr.rel (0) target = $region5
    $region4: #{self_attention_pallas.1} parent=1 // pred_region
      %s15 = ssub.s32 256, 256
      %16 = vsyncadd [#allocation3], %s15
      %s17 = sshll.u32 [#allocation2], 4
      %s18 = int_to_ptr.vmem [resolvable:$true] %s17
      %23 = dma.hbm_to_vmem [thread:$0]  %s0, 256, %s18, [#allocation3], 128, 128, 8
    $region5: #{self_attention_pallas.1} parent=1 // pred_fallthru
      _
    // Predicated region
    $region6: #{self_attention_pallas.1} parent=1 // pred_check
      _
    $region7: #{self_attention_pallas.1} parent=1 // pred_check_branch
      %25 = sbr.rel (0) target = $region9
    $region8: #{self_attention_pallas.1} parent=1 // pred_region
      %s27 = ssub.s32 512, 512
      %28 = vsyncadd [#allocation6], %s27
      %s29 = sshll.u32 [#allocation5], 4
      %s30 = int_to_ptr.vmem [resolvable:$true] %s29
      %35 = dma.hbm_to_vmem [thread:$0]  %s1, 512, %s30, [#allocation6], 128, 128, 8
    $region9: #{self_attention_pallas.1} parent=1 // pred_fallthru
      _
    // Predicated region
    $region10: #{self_attention_pallas.1} parent=1 // pred_check
      _
    $region11: #{self_attention_pallas.1} parent=1 // pred_check_branch
      %37 = sbr.rel (0) target = $region13
    $region12: #{self_attention_pallas.1} parent=1 // pred_region
      %s39 = ssub.s32 512, 512
      %40 = vsyncadd [#allocation6], %s39
      %s41 = sshll.u32 [#allocation7], 4
      %s42 = int_to_ptr.vmem [resolvable:$true] %s41
      %47 = dma.hbm_to_vmem [thread:$0]  %s2, 512, %s42, [#allocation6], 128, 128, 8
    $region13: #{self_attention_pallas.1} parent=1 // pred_fallthru
      _
    // Predicated region
    $region14: #{self_attention_pallas.1} parent=1 // pred_check
      _
    $region15: #{self_attention_pallas.1} parent=1 // pred_check_branch
      %49 = sbr.rel (0) target = $region17
    $region16: #{self_attention_pallas.1} parent=1 // pred_region
      _
    $region17: #{self_attention_pallas.1} parent=1 // pred_fallthru
      _
    // Predicated region
    $region18: #{self_attention_pallas.1} parent=1 // pred_check
      _
    $region19: #{self_attention_pallas.1} parent=1 // pred_check_branch
      %51 = sbr.rel (0) target = $region21
    $region20: #{self_attention_pallas.1} parent=1 // pred_region
      %52 = dma.done [#allocation3], 256
    $region21: #{self_attention_pallas.1} parent=1 // pred_fallthru
      _
    // Predicated region
    $region22: #{self_attention_pallas.1} parent=1 // pred_check
      _
    $region23: #{self_attention_pallas.1} parent=1 // pred_check_branch
      %54 = sbr.rel (0) target = $region25
    $region24: #{self_attention_pallas.1} parent=1 // pred_region
      %55 = dma.done [#allocation6], 512
    $region25: #{self_attention_pallas.1} parent=1 // pred_fallthru
      _
    // Predicated region
    $region26: #{self_attention_pallas.1} parent=1 // pred_check
      _
    $region27: #{self_attention_pallas.1} parent=1 // pred_check_branch
      %57 = sbr.rel (0) target = $region29
    $region28: #{self_attention_pallas.1} parent=1 // pred_region
      %58 = dma.done [#allocation6], 512
    $region29: #{self_attention_pallas.1} parent=1 // pred_fallthru
      _
    %v59 = vld [vmem:[#allocation2] sm:$0xff]
    %v60 = vld [vmem:[#allocation2 + $0x8] sm:$0xff]
    %v61 = vld [vmem:[#allocation5] sm:$0xff]
    %v62 = vld [vmem:[#allocation5 + $0x8] sm:$0xff]
    %v63 = vld [vmem:[#allocation5 + $0x10] sm:$0xff]
    %v64 = vld [vmem:[#allocation5 + $0x18] sm:$0xff]
    %vm65 = vcmask 261120
    %v67 = vsel %vm65, %v59, 0
    %v70 = vsel %vm65, %v60, 0
    %72 = vmatprep.subr.mxu0 0.0
    %73 = vmatpush1.msra.mxu0 %v61
    %74 = vmatprep.subr.mxu0 0.0
    %75 = vmatpush1.msra.mxu0 %v62
    %76 = vmatprep.subr.mxu0 0.0
    %77 = vmatpush1.msra.mxu0 %v63
    %78 = vmatprep.subr.mxu0 0.0
    %79 = vmatpush1.msra.mxu0 %v64
    %80 = vmatprep.subr.mxu0 0.0
    %81 = vmatpush1.msra.mxu0 0.0
    %82 = vmatprep.subr.mxu0 0.0
    %83 = vmatpush1.msra.mxu0 0.0
    %84 = vmatprep.subr.mxu0 0.0
    %85 = vmatpush1.msra.mxu0 0.0
    %86 = vmatprep.subr.mxu0 0.0
    %87 = vmatpush1.msra.mxu0 0.0
    %88 = vmatprep.subr.mxu0 0.0
    %89 = vmatpush1.msra.mxu0 0.0
    %90 = vmatprep.subr.mxu0 0.0
    %91 = vmatpush1.msra.mxu0 0.0
    %92 = vmatprep.subr.mxu0 0.0
    %93 = vmatpush1.msra.mxu0 0.0
    %94 = vmatprep.subr.mxu0 0.0
    %95 = vmatpush1.msra.mxu0 0.0
    %96 = vmatprep.subr.mxu0 0.0
    %97 = vmatpush1.msra.mxu0 0.0
    %98 = vmatprep.subr.mxu0 0.0
    %99 = vmatpush1.msra.mxu0 0.0
    %100 = vmatprep.subr.mxu0 0.0
    %101 = vmatpush1.msra.mxu0 0.0
    %102 = vmatprep.subr.mxu0 0.0
    %103 = vmatpush1.msra.mxu0 0.0
    %104 = vmatprep.subr.mxu0 0.0
    %105 = vmatpush1.msra.mxu0 0.0
    %106 = vmatprep.subr.mxu0 0.0
    %107 = vmatpush1.msra.mxu0 0.0
    %108 = vmatprep.subr.mxu0 0.0
    %109 = vmatpush1.msra.mxu0 0.0
    %110 = vmatprep.subr.mxu0 0.0
    %111 = vmatpush1.msra.mxu0 0.0
    %112 = vmatprep.subr.mxu0 0.0
    %113 = vmatpush1.msra.mxu0 0.0
    %114 = vmatprep.subr.mxu0 0.0
    %115 = vmatpush1.msra.mxu0 0.0
    %116 = vmatprep.subr.mxu0 0.0
    %117 = vmatpush1.msra.mxu0 0.0
    %118 = vmatprep.subr.mxu0 0.0
    %119 = vmatpush1.msra.mxu0 0.0
    %120 = vmatprep.subr.mxu0 0.0
    %121 = vmatpush1.msra.mxu0 0.0
    %122 = vmatprep.subr.mxu0 0.0
    %123 = vmatpush1.msra.mxu0 0.0
    %124 = vmatprep.subr.mxu0 0.0
    %125 = vmatpush1.msra.mxu0 0.0
    %126 = vmatprep.subr.mxu0 0.0
    %127 = vmatpush1.msra.mxu0 0.0
    %128 = vmatprep.subr.mxu0 0.0
    %129 = vmatpush1.msra.mxu0 0.0
    %130 = vmatprep.subr.mxu0 0.0
    %131 = vmatpush1.msra.mxu0 0.0
    %132 = vmatprep.subr.mxu0 0.0
    %133 = vmatpush1.msra.mxu0 0.0
    %134 = vmatprep.subr.mxu0 0.0
    %135 = vmatpush1.msra.mxu0 0.0
    %136 = vmatprep.mubr.f32.mxu0 0.0
    %137 = vmatmul.mubr.f32.gmra.mrb[0].mxu0 %v67
    %v138 = vpop.f32.mrb[0].mxu0
    %v139 = vadd.f32 0.0, %v138
    %v140 = vpop.f32.mrb[0].mxu0
    %141 = vmatprep.mubr.f32.mxu0 0.0
    %142 = vmatmul.mubr.f32.gmra.mrb[0].mxu0 %v70
    %v143 = vpop.f32.mrb[0].mxu0
    %v144 = vadd.f32 0.0, %v143
    %v145 = vpop.f32.mrb[0].mxu0
    %146 = vdwg.mxu0
    %148 = vrot.lane.b32.xlu0 %v139, 96
    %v149 = vpop.permute.xlu0 %148
    %vm150 = vcmask 64512
    %v151 = vsel %vm150, %v139, 0
    %v153 = vsel %vm150, %v149, 0
    %155 = vmatprep.subr.mxu0 0.0
    %156 = vmatpush1.xpose.msra.mxu0 %v153
    %157 = vmatprep.subr.mxu0 0.0
    %158 = vmatpush1.xpose.msra.mxu0 0.0
    %159 = vmatprep.subr.mxu0 0.0
    %160 = vmatpush1.xpose.msra.mxu0 0.0
    %161 = vmatprep.subr.mxu0 0.0
    %162 = vmatpush1.xpose.msra.mxu0 0.0
    %163 = vmatprep.subr.mxu0 0.0
    %164 = vmatpush1.xpose.msra.mxu0 0.0
    %165 = vmatprep.subr.mxu0 0.0
    %166 = vmatpush1.xpose.msra.mxu0 0.0
    %167 = vmatprep.subr.mxu0 0.0
    %168 = vmatpush1.xpose.msra.mxu0 0.0
    %169 = vmatprep.subr.mxu0 0.0
    %170 = vmatpush1.xpose.msra.mxu0 0.0
    %171 = vmatprep.subr.mxu0 0.0
    %172 = vmatpush1.xpose.msra.mxu0 0.0
    %173 = vmatprep.subr.mxu0 0.0
    %174 = vmatpush1.xpose.msra.mxu0 0.0
    %175 = vmatprep.subr.mxu0 0.0
    %176 = vmatpush1.xpose.msra.mxu0 0.0
    %177 = vmatprep.subr.mxu0 0.0
    %178 = vmatpush1.xpose.msra.mxu0 0.0
    %179 = vmatprep.subr.mxu0 0.0
    %180 = vmatpush1.xpose.msra.mxu0 0.0
    %181 = vmatprep.subr.mxu0 0.0
    %182 = vmatpush1.xpose.msra.mxu0 0.0
    %183 = vmatprep.subr.mxu0 0.0
    %184 = vmatpush1.xpose.msra.mxu0 0.0
    %185 = vmatprep.subr.mxu0 0.0
    %186 = vmatpush1.xpose.msra.mxu0 0.0
    %187 = vmatprep.subr.mxu0 0.0
    %188 = vmatpush1.xpose.msra.mxu0 0.0
    %189 = vmatprep.subr.mxu0 0.0
    %190 = vmatpush1.xpose.msra.mxu0 0.0
    %191 = vmatprep.subr.mxu0 0.0
    %192 = vmatpush1.xpose.msra.mxu0 0.0
    %193 = vmatprep.subr.mxu0 0.0
    %194 = vmatpush1.xpose.msra.mxu0 0.0
    %195 = vmatprep.subr.mxu0 0.0
    %196 = vmatpush1.xpose.msra.mxu0 0.0
    %197 = vmatprep.subr.mxu0 0.0
    %198 = vmatpush1.xpose.msra.mxu0 0.0
    %199 = vmatprep.subr.mxu0 0.0
    %200 = vmatpush1.xpose.msra.mxu0 0.0
    %201 = vmatprep.subr.mxu0 0.0
    %202 = vmatpush1.xpose.msra.mxu0 0.0
    %203 = vmatprep.subr.mxu0 0.0
    %204 = vmatpush1.xpose.msra.mxu0 0.0
    %205 = vmatprep.subr.mxu0 0.0
    %206 = vmatpush1.xpose.msra.mxu0 0.0
    %207 = vmatprep.subr.mxu0 0.0
    %208 = vmatpush1.xpose.msra.mxu0 0.0
    %209 = vmatprep.subr.mxu0 0.0
    %210 = vmatpush1.xpose.msra.mxu0 0.0
    %211 = vmatprep.subr.mxu0 0.0
    %212 = vmatpush1.xpose.msra.mxu0 0.0
    %213 = vmatprep.subr.mxu0 0.0
    %214 = vmatpush1.xpose.msra.mxu0 0.0
    %215 = vmatprep.subr.mxu0 0.0
    %216 = vmatpush1.xpose.msra.mxu0 0.0
    %217 = vmatprep.subr.mxu0 0.0
    %218 = vmatpush1.xpose.msra.mxu0 0.0
    %219 = vmatprep.mubr.f32.mxu0 0.0
    %220 = vmatmul.mubr.f32.gmra.mrb[0].mxu0 %v151
    %v221 = vpop.f32.mrb[0].mxu0
    %v222 = vadd.f32 0.0, %v221
    %v223 = vpop.f32.mrb[0].mxu0
    %224 = vdwg.mxu0
    %v225 = vsel %vm150, %v222, -inf
    %226 = vmax.xlane.f32.xlu0 %v225
    %v227 = vpop.xlane.xlu0 %226
    %v228 = vsub.f32 %v222, %v227
    %v229 = vmul.f32 %v228, 1.442695
    %v230 = vpow.pop %v229
    %v231 = vsel %vm150, %v230, 0.0
    %232 = vadd.xlane.f32.xlu0 %v231
    %v233 = vpop.xlane.xlu0 %232
    %v234 = vrcp.pop %v233
    %v235 = vmul.f32 %v230, %v234
    %236 = vrot.lane.b32.xlu0 %v139, 64
    %v237 = vpop.permute.xlu0 %236
    %v240 = vsel %vm150, %v235, 0
    %242 = vmatprep.subr.mxu0 0.0
    %243 = vmatpush1.msra.mxu0 %v237
    %244 = vmatprep.subr.mxu0 0.0
    %245 = vmatpush1.msra.mxu0 0.0
    %246 = vmatprep.subr.mxu0 0.0
    %247 = vmatpush1.msra.mxu0 0.0
    %248 = vmatprep.subr.mxu0 0.0
    %249 = vmatpush1.msra.mxu0 0.0
    %250 = vmatprep.subr.mxu0 0.0
    %251 = vmatpush1.msra.mxu0 0.0
    %252 = vmatprep.subr.mxu0 0.0
    %253 = vmatpush1.msra.mxu0 0.0
    %254 = vmatprep.subr.mxu0 0.0
    %255 = vmatpush1.msra.mxu0 0.0
    %256 = vmatprep.subr.mxu0 0.0
    %257 = vmatpush1.msra.mxu0 0.0
    %258 = vmatprep.subr.mxu0 0.0
    %259 = vmatpush1.msra.mxu0 0.0
    %260 = vmatprep.subr.mxu0 0.0
    %261 = vmatpush1.msra.mxu0 0.0
    %262 = vmatprep.subr.mxu0 0.0
    %263 = vmatpush1.msra.mxu0 0.0
    %264 = vmatprep.subr.mxu0 0.0
    %265 = vmatpush1.msra.mxu0 0.0
    %266 = vmatprep.subr.mxu0 0.0
    %267 = vmatpush1.msra.mxu0 0.0
    %268 = vmatprep.subr.mxu0 0.0
    %269 = vmatpush1.msra.mxu0 0.0
    %270 = vmatprep.subr.mxu0 0.0
    %271 = vmatpush1.msra.mxu0 0.0
    %272 = vmatprep.subr.mxu0 0.0
    %273 = vmatpush1.msra.mxu0 0.0
    %274 = vmatprep.subr.mxu0 0.0
    %275 = vmatpush1.msra.mxu0 0.0
    %276 = vmatprep.subr.mxu0 0.0
    %277 = vmatpush1.msra.mxu0 0.0
    %278 = vmatprep.subr.mxu0 0.0
    %279 = vmatpush1.msra.mxu0 0.0
    %280 = vmatprep.subr.mxu0 0.0
    %281 = vmatpush1.msra.mxu0 0.0
    %282 = vmatprep.subr.mxu0 0.0
    %283 = vmatpush1.msra.mxu0 0.0
    %284 = vmatprep.subr.mxu0 0.0
    %285 = vmatpush1.msra.mxu0 0.0
    %286 = vmatprep.subr.mxu0 0.0
    %287 = vmatpush1.msra.mxu0 0.0
    %288 = vmatprep.subr.mxu0 0.0
    %289 = vmatpush1.msra.mxu0 0.0
    %290 = vmatprep.subr.mxu0 0.0
    %291 = vmatpush1.msra.mxu0 0.0
    %292 = vmatprep.subr.mxu0 0.0
    %293 = vmatpush1.msra.mxu0 0.0
    %294 = vmatprep.subr.mxu0 0.0
    %295 = vmatpush1.msra.mxu0 0.0
    %296 = vmatprep.subr.mxu0 0.0
    %297 = vmatpush1.msra.mxu0 0.0
    %298 = vmatprep.subr.mxu0 0.0
    %299 = vmatpush1.msra.mxu0 0.0
    %300 = vmatprep.subr.mxu0 0.0
    %301 = vmatpush1.msra.mxu0 0.0
    %302 = vmatprep.subr.mxu0 0.0
    %303 = vmatpush1.msra.mxu0 0.0
    %304 = vmatprep.subr.mxu0 0.0
    %305 = vmatpush1.msra.mxu0 0.0
    %306 = vmatprep.mubr.f32.mxu0 0.0
    %307 = vmatmul.mubr.f32.gmra.mrb[0].mxu0 %v240
    %v308 = vpop.f32.mrb[0].mxu0
    %v309 = vadd.f32 0.0, %v308
    %v310 = vpop.f32.mrb[0].mxu0
    %311 = vdwg.mxu0
    %312 = vrot.lane.b32.xlu0 %v139, 120
    %v313 = vpop.permute.xlu0 %312
    %314 = vrot.lane.b32.xlu0 %v139, 88
    %v315 = vpop.permute.xlu0 %314
    %v316 = vsel %vm150, %v313, 0
    %v318 = vsel %vm150, %v315, 0
    %320 = vmatprep.subr.mxu0 0.0
    %321 = vmatpush1.xpose.msra.mxu0 %v318
    %322 = vmatprep.subr.mxu0 0.0
    %323 = vmatpush1.xpose.msra.mxu0 0.0
    %324 = vmatprep.subr.mxu0 0.0
    %325 = vmatpush1.xpose.msra.mxu0 0.0
    %326 = vmatprep.subr.mxu0 0.0
    %327 = vmatpush1.xpose.msra.mxu0 0.0
    %328 = vmatprep.subr.mxu0 0.0
    %329 = vmatpush1.xpose.msra.mxu0 0.0
    %330 = vmatprep.subr.mxu0 0.0
    %331 = vmatpush1.xpose.msra.mxu0 0.0
    %332 = vmatprep.subr.mxu0 0.0
    %333 = vmatpush1.xpose.msra.mxu0 0.0
    %334 = vmatprep.subr.mxu0 0.0
    %335 = vmatpush1.xpose.msra.mxu0 0.0
    %336 = vmatprep.subr.mxu0 0.0
    %337 = vmatpush1.xpose.msra.mxu0 0.0
    %338 = vmatprep.subr.mxu0 0.0
    %339 = vmatpush1.xpose.msra.mxu0 0.0
    %340 = vmatprep.subr.mxu0 0.0
    %341 = vmatpush1.xpose.msra.mxu0 0.0
    %342 = vmatprep.subr.mxu0 0.0
    %343 = vmatpush1.xpose.msra.mxu0 0.0
    %344 = vmatprep.subr.mxu0 0.0
    %345 = vmatpush1.xpose.msra.mxu0 0.0
    %346 = vmatprep.subr.mxu0 0.0
    %347 = vmatpush1.xpose.msra.mxu0 0.0
    %348 = vmatprep.subr.mxu0 0.0
    %349 = vmatpush1.xpose.msra.mxu0 0.0
    %350 = vmatprep.subr.mxu0 0.0
    %351 = vmatpush1.xpose.msra.mxu0 0.0
    %352 = vmatprep.subr.mxu0 0.0
    %353 = vmatpush1.xpose.msra.mxu0 0.0
    %354 = vmatprep.subr.mxu0 0.0
    %355 = vmatpush1.xpose.msra.mxu0 0.0
    %356 = vmatprep.subr.mxu0 0.0
    %357 = vmatpush1.xpose.msra.mxu0 0.0
    %358 = vmatprep.subr.mxu0 0.0
    %359 = vmatpush1.xpose.msra.mxu0 0.0
    %360 = vmatprep.subr.mxu0 0.0
    %361 = vmatpush1.xpose.msra.mxu0 0.0
    %362 = vmatprep.subr.mxu0 0.0
    %363 = vmatpush1.xpose.msra.mxu0 0.0
    %364 = vmatprep.subr.mxu0 0.0
    %365 = vmatpush1.xpose.msra.mxu0 0.0
    %366 = vmatprep.subr.mxu0 0.0
    %367 = vmatpush1.xpose.msra.mxu0 0.0
    %368 = vmatprep.subr.mxu0 0.0
    %369 = vmatpush1.xpose.msra.mxu0 0.0
    %370 = vmatprep.subr.mxu0 0.0
    %371 = vmatpush1.xpose.msra.mxu0 0.0
    %372 = vmatprep.subr.mxu0 0.0
    %373 = vmatpush1.xpose.msra.mxu0 0.0
    %374 = vmatprep.subr.mxu0 0.0
    %375 = vmatpush1.xpose.msra.mxu0 0.0
    %376 = vmatprep.subr.mxu0 0.0
    %377 = vmatpush1.xpose.msra.mxu0 0.0
    %378 = vmatprep.subr.mxu0 0.0
    %379 = vmatpush1.xpose.msra.mxu0 0.0
    %380 = vmatprep.subr.mxu0 0.0
    %381 = vmatpush1.xpose.msra.mxu0 0.0
    %382 = vmatprep.subr.mxu0 0.0
    %383 = vmatpush1.xpose.msra.mxu0 0.0
    %384 = vmatprep.mubr.f32.mxu0 0.0
    %385 = vmatmul.mubr.f32.gmra.mrb[0].mxu0 %v316
    %v386 = vpop.f32.mrb[0].mxu0
    %v387 = vadd.f32 0.0, %v386
    %v388 = vpop.f32.mrb[0].mxu0
    %389 = vdwg.mxu0
    %v390 = vsel %vm150, %v387, -inf
    %391 = vmax.xlane.f32.xlu0 %v390
    %v392 = vpop.xlane.xlu0 %391
    %v393 = vsub.f32 %v387, %v392
    %v394 = vmul.f32 %v393, 1.442695
    %v395 = vpow.pop %v394
    %v396 = vsel %vm150, %v395, 0.0
    %397 = vadd.xlane.f32.xlu0 %v396
    %v398 = vpop.xlane.xlu0 %397
    %v399 = vrcp.pop %v398
    %v400 = vmul.f32 %v395, %v399
    %401 = vrot.lane.b32.xlu0 %v139, 56
    %v402 = vpop.permute.xlu0 %401
    %v405 = vsel %vm150, %v400, 0
    %407 = vmatprep.subr.mxu0 0.0
    %408 = vmatpush1.msra.mxu0 %v402
    %409 = vmatprep.subr.mxu0 0.0
    %410 = vmatpush1.msra.mxu0 0.0
    %411 = vmatprep.subr.mxu0 0.0
    %412 = vmatpush1.msra.mxu0 0.0
    %413 = vmatprep.subr.mxu0 0.0
    %414 = vmatpush1.msra.mxu0 0.0
    %415 = vmatprep.subr.mxu0 0.0
    %416 = vmatpush1.msra.mxu0 0.0
    %417 = vmatprep.subr.mxu0 0.0
    %418 = vmatpush1.msra.mxu0 0.0
    %419 = vmatprep.subr.mxu0 0.0
    %420 = vmatpush1.msra.mxu0 0.0
    %421 = vmatprep.subr.mxu0 0.0
    %422 = vmatpush1.msra.mxu0 0.0
    %423 = vmatprep.subr.mxu0 0.0
    %424 = vmatpush1.msra.mxu0 0.0
    %425 = vmatprep.subr.mxu0 0.0
    %426 = vmatpush1.msra.mxu0 0.0
    %427 = vmatprep.subr.mxu0 0.0
    %428 = vmatpush1.msra.mxu0 0.0
    %429 = vmatprep.subr.mxu0 0.0
    %430 = vmatpush1.msra.mxu0 0.0
    %431 = vmatprep.subr.mxu0 0.0
    %432 = vmatpush1.msra.mxu0 0.0
    %433 = vmatprep.subr.mxu0 0.0
    %434 = vmatpush1.msra.mxu0 0.0
    %435 = vmatprep.subr.mxu0 0.0
    %436 = vmatpush1.msra.mxu0 0.0
    %437 = vmatprep.subr.mxu0 0.0
    %438 = vmatpush1.msra.mxu0 0.0
    %439 = vmatprep.subr.mxu0 0.0
    %440 = vmatpush1.msra.mxu0 0.0
    %441 = vmatprep.subr.mxu0 0.0
    %442 = vmatpush1.msra.mxu0 0.0
    %443 = vmatprep.subr.mxu0 0.0
    %444 = vmatpush1.msra.mxu0 0.0
    %445 = vmatprep.subr.mxu0 0.0
    %446 = vmatpush1.msra.mxu0 0.0
    %447 = vmatprep.subr.mxu0 0.0
    %448 = vmatpush1.msra.mxu0 0.0
    %449 = vmatprep.subr.mxu0 0.0
    %450 = vmatpush1.msra.mxu0 0.0
    %451 = vmatprep.subr.mxu0 0.0
    %452 = vmatpush1.msra.mxu0 0.0
    %453 = vmatprep.subr.mxu0 0.0
    %454 = vmatpush1.msra.mxu0 0.0
    %455 = vmatprep.subr.mxu0 0.0
    %456 = vmatpush1.msra.mxu0 0.0
    %457 = vmatprep.subr.mxu0 0.0
    %458 = vmatpush1.msra.mxu0 0.0
    %459 = vmatprep.subr.mxu0 0.0
    %460 = vmatpush1.msra.mxu0 0.0
    %461 = vmatprep.subr.mxu0 0.0
    %462 = vmatpush1.msra.mxu0 0.0
    %463 = vmatprep.subr.mxu0 0.0
    %464 = vmatpush1.msra.mxu0 0.0
    %465 = vmatprep.subr.mxu0 0.0
    %466 = vmatpush1.msra.mxu0 0.0
    %467 = vmatprep.subr.mxu0 0.0
    %468 = vmatpush1.msra.mxu0 0.0
    %469 = vmatprep.subr.mxu0 0.0
    %470 = vmatpush1.msra.mxu0 0.0
    %471 = vmatprep.mubr.f32.mxu0 0.0
    %472 = vmatmul.mubr.f32.gmra.mrb[0].mxu0 %v405
    %v473 = vpop.f32.mrb[0].mxu0
    %v474 = vadd.f32 0.0, %v473
    %v475 = vpop.f32.mrb[0].mxu0
    %476 = vdwg.mxu0
    %477 = vrot.lane.b32.xlu0 %v139, 112
    %v478 = vpop.permute.xlu0 %477
    %479 = vrot.lane.b32.xlu0 %v139, 80
    %v480 = vpop.permute.xlu0 %479
    %v481 = vsel %vm150, %v478, 0
    %v483 = vsel %vm150, %v480, 0
    %485 = vmatprep.subr.mxu0 0.0
    %486 = vmatpush1.xpose.msra.mxu0 %v483
    %487 = vmatprep.subr.mxu0 0.0
    %488 = vmatpush1.xpose.msra.mxu0 0.0
    %489 = vmatprep.subr.mxu0 0.0
    %490 = vmatpush1.xpose.msra.mxu0 0.0
    %491 = vmatprep.subr.mxu0 0.0
    %492 = vmatpush1.xpose.msra.mxu0 0.0
    %493 = vmatprep.subr.mxu0 0.0
    %494 = vmatpush1.xpose.msra.mxu0 0.0
    %495 = vmatprep.subr.mxu0 0.0
    %496 = vmatpush1.xpose.msra.mxu0 0.0
    %497 = vmatprep.subr.mxu0 0.0
    %498 = vmatpush1.xpose.msra.mxu0 0.0
    %499 = vmatprep.subr.mxu0 0.0
    %500 = vmatpush1.xpose.msra.mxu0 0.0
    %501 = vmatprep.subr.mxu0 0.0
    %502 = vmatpush1.xpose.msra.mxu0 0.0
    %503 = vmatprep.subr.mxu0 0.0
    %504 = vmatpush1.xpose.msra.mxu0 0.0
    %505 = vmatprep.subr.mxu0 0.0
    %506 = vmatpush1.xpose.msra.mxu0 0.0
    %507 = vmatprep.subr.mxu0 0.0
    %508 = vmatpush1.xpose.msra.mxu0 0.0
    %509 = vmatprep.subr.mxu0 0.0
    %510 = vmatpush1.xpose.msra.mxu0 0.0
    %511 = vmatprep.subr.mxu0 0.0
    %512 = vmatpush1.xpose.msra.mxu0 0.0
    %513 = vmatprep.subr.mxu0 0.0
    %514 = vmatpush1.xpose.msra.mxu0 0.0
    %515 = vmatprep.subr.mxu0 0.0
    %516 = vmatpush1.xpose.msra.mxu0 0.0
    %517 = vmatprep.subr.mxu0 0.0
    %518 = vmatpush1.xpose.msra.mxu0 0.0
    %519 = vmatprep.subr.mxu0 0.0
    %520 = vmatpush1.xpose.msra.mxu0 0.0
    %521 = vmatprep.subr.mxu0 0.0
    %522 = vmatpush1.xpose.msra.mxu0 0.0
    %523 = vmatprep.subr.mxu0 0.0
    %524 = vmatpush1.xpose.msra.mxu0 0.0
    %525 = vmatprep.subr.mxu0 0.0
    %526 = vmatpush1.xpose.msra.mxu0 0.0
    %527 = vmatprep.subr.mxu0 0.0
    %528 = vmatpush1.xpose.msra.mxu0 0.0
    %529 = vmatprep.subr.mxu0 0.0
    %530 = vmatpush1.xpose.msra.mxu0 0.0
    %531 = vmatprep.subr.mxu0 0.0
    %532 = vmatpush1.xpose.msra.mxu0 0.0
    %533 = vmatprep.subr.mxu0 0.0
    %534 = vmatpush1.xpose.msra.mxu0 0.0
    %535 = vmatprep.subr.mxu0 0.0
    %536 = vmatpush1.xpose.msra.mxu0 0.0
    %537 = vmatprep.subr.mxu0 0.0
    %538 = vmatpush1.xpose.msra.mxu0 0.0
    %539 = vmatprep.subr.mxu0 0.0
    %540 = vmatpush1.xpose.msra.mxu0 0.0
    %541 = vmatprep.subr.mxu0 0.0
    %542 = vmatpush1.xpose.msra.mxu0 0.0
    %543 = vmatprep.subr.mxu0 0.0
    %544 = vmatpush1.xpose.msra.mxu0 0.0
    %545 = vmatprep.subr.mxu0 0.0
    %546 = vmatpush1.xpose.msra.mxu0 0.0
    %547 = vmatprep.subr.mxu0 0.0
    %548 = vmatpush1.xpose.msra.mxu0 0.0
    %549 = vmatprep.mubr.f32.mxu0 0.0
    %550 = vmatmul.mubr.f32.gmra.mrb[0].mxu0 %v481
    %v551 = vpop.f32.mrb[0].mxu0
    %v552 = vadd.f32 0.0, %v551
    %v553 = vpop.f32.mrb[0].mxu0
    %554 = vdwg.mxu0
    %v555 = vsel %vm150, %v552, -inf
    %556 = vmax.xlane.f32.xlu0 %v555
    %v557 = vpop.xlane.xlu0 %556
    %v558 = vsub.f32 %v552, %v557
    %v559 = vmul.f32 %v558, 1.442695
    %v560 = vpow.pop %v559
    %v561 = vsel %vm150, %v560, 0.0
    %562 = vadd.xlane.f32.xlu0 %v561
    %v563 = vpop.xlane.xlu0 %562
    %v564 = vrcp.pop %v563
    %v565 = vmul.f32 %v560, %v564
    %566 = vrot.lane.b32.xlu0 %v139, 48
    %v567 = vpop.permute.xlu0 %566
    %v570 = vsel %vm150, %v565, 0
    %572 = vmatprep.subr.mxu0 0.0
    %573 = vmatpush1.msra.mxu0 %v567
    %574 = vmatprep.subr.mxu0 0.0
    %575 = vmatpush1.msra.mxu0 0.0
    %576 = vmatprep.subr.mxu0 0.0
    %577 = vmatpush1.msra.mxu0 0.0
    %578 = vmatprep.subr.mxu0 0.0
    %579 = vmatpush1.msra.mxu0 0.0
    %580 = vmatprep.subr.mxu0 0.0
    %581 = vmatpush1.msra.mxu0 0.0
    %582 = vmatprep.subr.mxu0 0.0
    %583 = vmatpush1.msra.mxu0 0.0
    %584 = vmatprep.subr.mxu0 0.0
    %585 = vmatpush1.msra.mxu0 0.0
    %586 = vmatprep.subr.mxu0 0.0
    %587 = vmatpush1.msra.mxu0 0.0
    %588 = vmatprep.subr.mxu0 0.0
    %589 = vmatpush1.msra.mxu0 0.0
    %590 = vmatprep.subr.mxu0 0.0
    %591 = vmatpush1.msra.mxu0 0.0
    %592 = vmatprep.subr.mxu0 0.0
    %593 = vmatpush1.msra.mxu0 0.0
    %594 = vmatprep.subr.mxu0 0.0
    %595 = vmatpush1.msra.mxu0 0.0
    %596 = vmatprep.subr.mxu0 0.0
    %597 = vmatpush1.msra.mxu0 0.0
    %598 = vmatprep.subr.mxu0 0.0
    %599 = vmatpush1.msra.mxu0 0.0
    %600 = vmatprep.subr.mxu0 0.0
    %601 = vmatpush1.msra.mxu0 0.0
    %602 = vmatprep.subr.mxu0 0.0
    %603 = vmatpush1.msra.mxu0 0.0
    %604 = vmatprep.subr.mxu0 0.0
    %605 = vmatpush1.msra.mxu0 0.0
    %606 = vmatprep.subr.mxu0 0.0
    %607 = vmatpush1.msra.mxu0 0.0
    %608 = vmatprep.subr.mxu0 0.0
    %609 = vmatpush1.msra.mxu0 0.0
    %610 = vmatprep.subr.mxu0 0.0
    %611 = vmatpush1.msra.mxu0 0.0
    %612 = vmatprep.subr.mxu0 0.0
    %613 = vmatpush1.msra.mxu0 0.0
    %614 = vmatprep.subr.mxu0 0.0
    %615 = vmatpush1.msra.mxu0 0.0
    %616 = vmatprep.subr.mxu0 0.0
    %617 = vmatpush1.msra.mxu0 0.0
    %618 = vmatprep.subr.mxu0 0.0
    %619 = vmatpush1.msra.mxu0 0.0
    %620 = vmatprep.subr.mxu0 0.0
    %621 = vmatpush1.msra.mxu0 0.0
    %622 = vmatprep.subr.mxu0 0.0
    %623 = vmatpush1.msra.mxu0 0.0
    %624 = vmatprep.subr.mxu0 0.0
    %625 = vmatpush1.msra.mxu0 0.0
    %626 = vmatprep.subr.mxu0 0.0
    %627 = vmatpush1.msra.mxu0 0.0
    %628 = vmatprep.subr.mxu0 0.0
    %629 = vmatpush1.msra.mxu0 0.0
    %630 = vmatprep.subr.mxu0 0.0
    %631 = vmatpush1.msra.mxu0 0.0
    %632 = vmatprep.subr.mxu0 0.0
    %633 = vmatpush1.msra.mxu0 0.0
    %634 = vmatprep.subr.mxu0 0.0
    %635 = vmatpush1.msra.mxu0 0.0
    %636 = vmatprep.mubr.f32.mxu0 0.0
    %637 = vmatmul.mubr.f32.gmra.mrb[0].mxu0 %v570
    %v638 = vpop.f32.mrb[0].mxu0
    %v639 = vadd.f32 0.0, %v638
    %v640 = vpop.f32.mrb[0].mxu0
    %641 = vdwg.mxu0
    %642 = vrot.lane.b32.xlu0 %v139, 104
    %v643 = vpop.permute.xlu0 %642
    %644 = vrot.lane.b32.xlu0 %v139, 72
    %v645 = vpop.permute.xlu0 %644
    %v646 = vsel %vm150, %v643, 0
    %v648 = vsel %vm150, %v645, 0
    %650 = vmatprep.subr.mxu0 0.0
    %651 = vmatpush1.xpose.msra.mxu0 %v648
    %652 = vmatprep.subr.mxu0 0.0
    %653 = vmatpush1.xpose.msra.mxu0 0.0
    %654 = vmatprep.subr.mxu0 0.0
    %655 = vmatpush1.xpose.msra.mxu0 0.0
    %656 = vmatprep.subr.mxu0 0.0
    %657 = vmatpush1.xpose.msra.mxu0 0.0
    %658 = vmatprep.subr.mxu0 0.0
    %659 = vmatpush1.xpose.msra.mxu0 0.0
    %660 = vmatprep.subr.mxu0 0.0
    %661 = vmatpush1.xpose.msra.mxu0 0.0
    %662 = vmatprep.subr.mxu0 0.0
    %663 = vmatpush1.xpose.msra.mxu0 0.0
    %664 = vmatprep.subr.mxu0 0.0
    %665 = vmatpush1.xpose.msra.mxu0 0.0
    %666 = vmatprep.subr.mxu0 0.0
    %667 = vmatpush1.xpose.msra.mxu0 0.0
    %668 = vmatprep.subr.mxu0 0.0
    %669 = vmatpush1.xpose.msra.mxu0 0.0
    %670 = vmatprep.subr.mxu0 0.0
    %671 = vmatpush1.xpose.msra.mxu0 0.0
    %672 = vmatprep.subr.mxu0 0.0
    %673 = vmatpush1.xpose.msra.mxu0 0.0
    %674 = vmatprep.subr.mxu0 0.0
    %675 = vmatpush1.xpose.msra.mxu0 0.0
    %676 = vmatprep.subr.mxu0 0.0
    %677 = vmatpush1.xpose.msra.mxu0 0.0
    %678 = vmatprep.subr.mxu0 0.0
    %679 = vmatpush1.xpose.msra.mxu0 0.0
    %680 = vmatprep.subr.mxu0 0.0
    %681 = vmatpush1.xpose.msra.mxu0 0.0
    %682 = vmatprep.subr.mxu0 0.0
    %683 = vmatpush1.xpose.msra.mxu0 0.0
    %684 = vmatprep.subr.mxu0 0.0
    %685 = vmatpush1.xpose.msra.mxu0 0.0
    %686 = vmatprep.subr.mxu0 0.0
    %687 = vmatpush1.xpose.msra.mxu0 0.0
    %688 = vmatprep.subr.mxu0 0.0
    %689 = vmatpush1.xpose.msra.mxu0 0.0
    %690 = vmatprep.subr.mxu0 0.0
    %691 = vmatpush1.xpose.msra.mxu0 0.0
    %692 = vmatprep.subr.mxu0 0.0
    %693 = vmatpush1.xpose.msra.mxu0 0.0
    %694 = vmatprep.subr.mxu0 0.0
    %695 = vmatpush1.xpose.msra.mxu0 0.0
    %696 = vmatprep.subr.mxu0 0.0
    %697 = vmatpush1.xpose.msra.mxu0 0.0
    %698 = vmatprep.subr.mxu0 0.0
    %699 = vmatpush1.xpose.msra.mxu0 0.0
    %700 = vmatprep.subr.mxu0 0.0
    %701 = vmatpush1.xpose.msra.mxu0 0.0
    %702 = vmatprep.subr.mxu0 0.0
    %703 = vmatpush1.xpose.msra.mxu0 0.0
    %704 = vmatprep.subr.mxu0 0.0
    %705 = vmatpush1.xpose.msra.mxu0 0.0
    %706 = vmatprep.subr.mxu0 0.0
    %707 = vmatpush1.xpose.msra.mxu0 0.0
    %708 = vmatprep.subr.mxu0 0.0
    %709 = vmatpush1.xpose.msra.mxu0 0.0
    %710 = vmatprep.subr.mxu0 0.0
    %711 = vmatpush1.xpose.msra.mxu0 0.0
    %712 = vmatprep.subr.mxu0 0.0
    %713 = vmatpush1.xpose.msra.mxu0 0.0
    %714 = vmatprep.mubr.f32.mxu0 0.0
    %715 = vmatmul.mubr.f32.gmra.mrb[0].mxu0 %v646
    %v716 = vpop.f32.mrb[0].mxu0
    %v717 = vadd.f32 0.0, %v716
    %v718 = vpop.f32.mrb[0].mxu0
    %719 = vdwg.mxu0
    %v720 = vsel %vm150, %v717, -inf
    %721 = vmax.xlane.f32.xlu0 %v720
    %v722 = vpop.xlane.xlu0 %721
    %v723 = vsub.f32 %v717, %v722
    %v724 = vmul.f32 %v723, 1.442695
    %v725 = vpow.pop %v724
    %v726 = vsel %vm150, %v725, 0.0
    %727 = vadd.xlane.f32.xlu0 %v726
    %v728 = vpop.xlane.xlu0 %727
    %v729 = vrcp.pop %v728
    %v730 = vmul.f32 %v725, %v729
    %731 = vrot.lane.b32.xlu0 %v139, 40
    %v732 = vpop.permute.xlu0 %731
    %v735 = vsel %vm150, %v730, 0
    %737 = vmatprep.subr.mxu0 0.0
    %738 = vmatpush1.msra.mxu0 %v732
    %739 = vmatprep.subr.mxu0 0.0
    %740 = vmatpush1.msra.mxu0 0.0
    %741 = vmatprep.subr.mxu0 0.0
    %742 = vmatpush1.msra.mxu0 0.0
    %743 = vmatprep.subr.mxu0 0.0
    %744 = vmatpush1.msra.mxu0 0.0
    %745 = vmatprep.subr.mxu0 0.0
    %746 = vmatpush1.msra.mxu0 0.0
    %747 = vmatprep.subr.mxu0 0.0
    %748 = vmatpush1.msra.mxu0 0.0
    %749 = vmatprep.subr.mxu0 0.0
    %750 = vmatpush1.msra.mxu0 0.0
    %751 = vmatprep.subr.mxu0 0.0
    %752 = vmatpush1.msra.mxu0 0.0
    %753 = vmatprep.subr.mxu0 0.0
    %754 = vmatpush1.msra.mxu0 0.0
    %755 = vmatprep.subr.mxu0 0.0
    %756 = vmatpush1.msra.mxu0 0.0
    %757 = vmatprep.subr.mxu0 0.0
    %758 = vmatpush1.msra.mxu0 0.0
    %759 = vmatprep.subr.mxu0 0.0
    %760 = vmatpush1.msra.mxu0 0.0
    %761 = vmatprep.subr.mxu0 0.0
    %762 = vmatpush1.msra.mxu0 0.0
    %763 = vmatprep.subr.mxu0 0.0
    %764 = vmatpush1.msra.mxu0 0.0
    %765 = vmatprep.subr.mxu0 0.0
    %766 = vmatpush1.msra.mxu0 0.0
    %767 = vmatprep.subr.mxu0 0.0
    %768 = vmatpush1.msra.mxu0 0.0
    %769 = vmatprep.subr.mxu0 0.0
    %770 = vmatpush1.msra.mxu0 0.0
    %771 = vmatprep.subr.mxu0 0.0
    %772 = vmatpush1.msra.mxu0 0.0
    %773 = vmatprep.subr.mxu0 0.0
    %774 = vmatpush1.msra.mxu0 0.0
    %775 = vmatprep.subr.mxu0 0.0
    %776 = vmatpush1.msra.mxu0 0.0
    %777 = vmatprep.subr.mxu0 0.0
    %778 = vmatpush1.msra.mxu0 0.0
    %779 = vmatprep.subr.mxu0 0.0
    %780 = vmatpush1.msra.mxu0 0.0
    %781 = vmatprep.subr.mxu0 0.0
    %782 = vmatpush1.msra.mxu0 0.0
    %783 = vmatprep.subr.mxu0 0.0
    %784 = vmatpush1.msra.mxu0 0.0
    %785 = vmatprep.subr.mxu0 0.0
    %786 = vmatpush1.msra.mxu0 0.0
    %787 = vmatprep.subr.mxu0 0.0
    %788 = vmatpush1.msra.mxu0 0.0
    %789 = vmatprep.subr.mxu0 0.0
    %790 = vmatpush1.msra.mxu0 0.0
    %791 = vmatprep.subr.mxu0 0.0
    %792 = vmatpush1.msra.mxu0 0.0
    %793 = vmatprep.subr.mxu0 0.0
    %794 = vmatpush1.msra.mxu0 0.0
    %795 = vmatprep.subr.mxu0 0.0
    %796 = vmatpush1.msra.mxu0 0.0
    %797 = vmatprep.subr.mxu0 0.0
    %798 = vmatpush1.msra.mxu0 0.0
    %799 = vmatprep.subr.mxu0 0.0
    %800 = vmatpush1.msra.mxu0 0.0
    %801 = vmatprep.mubr.f32.mxu0 0.0
    %802 = vmatmul.mubr.f32.gmra.mrb[0].mxu0 %v735
    %v803 = vpop.f32.mrb[0].mxu0
    %v804 = vadd.f32 0.0, %v803
    %v805 = vpop.f32.mrb[0].mxu0
    %806 = vdwg.mxu0
    %808 = vrot.lane.b32.xlu0 %v474, 8
    %v809 = vpop.permute.xlu0 %808
    %812 = vrot.lane.b32.xlu0 %v639, 16
    %v813 = vpop.permute.xlu0 %812
    %816 = vrot.lane.b32.xlu0 %v804, 24
    %v817 = vpop.permute.xlu0 %816
    %v819 = vsel %vm150, %v309, %v809
    %vm820 = vcmask 130048
    %v821 = vsel %vm820, %v819, %v813
    %vm822 = vcmask 195584
    %v823 = vsel %vm822, %v821, %v817
    %825 = vrot.lane.b32.xlu0 %v144, 96
    %v826 = vpop.permute.xlu0 %825
    %v827 = vsel %vm150, %v144, 0
    %v829 = vsel %vm150, %v826, 0
    %831 = vmatprep.subr.mxu0 0.0
    %832 = vmatpush1.xpose.msra.mxu0 %v829
    %833 = vmatprep.subr.mxu0 0.0
    %834 = vmatpush1.xpose.msra.mxu0 0.0
    %835 = vmatprep.subr.mxu0 0.0
    %836 = vmatpush1.xpose.msra.mxu0 0.0
    %837 = vmatprep.subr.mxu0 0.0
    %838 = vmatpush1.xpose.msra.mxu0 0.0
    %839 = vmatprep.subr.mxu0 0.0
    %840 = vmatpush1.xpose.msra.mxu0 0.0
    %841 = vmatprep.subr.mxu0 0.0
    %842 = vmatpush1.xpose.msra.mxu0 0.0
    %843 = vmatprep.subr.mxu0 0.0
    %844 = vmatpush1.xpose.msra.mxu0 0.0
    %845 = vmatprep.subr.mxu0 0.0
    %846 = vmatpush1.xpose.msra.mxu0 0.0
    %847 = vmatprep.subr.mxu0 0.0
    %848 = vmatpush1.xpose.msra.mxu0 0.0
    %849 = vmatprep.subr.mxu0 0.0
    %850 = vmatpush1.xpose.msra.mxu0 0.0
    %851 = vmatprep.subr.mxu0 0.0
    %852 = vmatpush1.xpose.msra.mxu0 0.0
    %853 = vmatprep.subr.mxu0 0.0
    %854 = vmatpush1.xpose.msra.mxu0 0.0
    %855 = vmatprep.subr.mxu0 0.0
    %856 = vmatpush1.xpose.msra.mxu0 0.0
    %857 = vmatprep.subr.mxu0 0.0
    %858 = vmatpush1.xpose.msra.mxu0 0.0
    %859 = vmatprep.subr.mxu0 0.0
    %860 = vmatpush1.xpose.msra.mxu0 0.0
    %861 = vmatprep.subr.mxu0 0.0
    %862 = vmatpush1.xpose.msra.mxu0 0.0
    %863 = vmatprep.subr.mxu0 0.0
    %864 = vmatpush1.xpose.msra.mxu0 0.0
    %865 = vmatprep.subr.mxu0 0.0
    %866 = vmatpush1.xpose.msra.mxu0 0.0
    %867 = vmatprep.subr.mxu0 0.0
    %868 = vmatpush1.xpose.msra.mxu0 0.0
    %869 = vmatprep.subr.mxu0 0.0
    %870 = vmatpush1.xpose.msra.mxu0 0.0
    %871 = vmatprep.subr.mxu0 0.0
    %872 = vmatpush1.xpose.msra.mxu0 0.0
    %873 = vmatprep.subr.mxu0 0.0
    %874 = vmatpush1.xpose.msra.mxu0 0.0
    %875 = vmatprep.subr.mxu0 0.0
    %876 = vmatpush1.xpose.msra.mxu0 0.0
    %877 = vmatprep.subr.mxu0 0.0
    %878 = vmatpush1.xpose.msra.mxu0 0.0
    %879 = vmatprep.subr.mxu0 0.0
    %880 = vmatpush1.xpose.msra.mxu0 0.0
    %881 = vmatprep.subr.mxu0 0.0
    %882 = vmatpush1.xpose.msra.mxu0 0.0
    %883 = vmatprep.subr.mxu0 0.0
    %884 = vmatpush1.xpose.msra.mxu0 0.0
    %885 = vmatprep.subr.mxu0 0.0
    %886 = vmatpush1.xpose.msra.mxu0 0.0
    %887 = vmatprep.subr.mxu0 0.0
    %888 = vmatpush1.xpose.msra.mxu0 0.0
    %889 = vmatprep.subr.mxu0 0.0
    %890 = vmatpush1.xpose.msra.mxu0 0.0
    %891 = vmatprep.subr.mxu0 0.0
    %892 = vmatpush1.xpose.msra.mxu0 0.0
    %893 = vmatprep.subr.mxu0 0.0
    %894 = vmatpush1.xpose.msra.mxu0 0.0
    %895 = vmatprep.mubr.f32.mxu0 0.0
    %896 = vmatmul.mubr.f32.gmra.mrb[0].mxu0 %v827
    %v897 = vpop.f32.mrb[0].mxu0
    %v898 = vadd.f32 0.0, %v897
    %v899 = vpop.f32.mrb[0].mxu0
    %900 = vdwg.mxu0
    %v901 = vsel %vm150, %v898, -inf
    %902 = vmax.xlane.f32.xlu0 %v901
    %v903 = vpop.xlane.xlu0 %902
    %v904 = vsub.f32 %v898, %v903
    %v905 = vmul.f32 %v904, 1.442695
    %v906 = vpow.pop %v905
    %v907 = vsel %vm150, %v906, 0.0
    %908 = vadd.xlane.f32.xlu0 %v907
    %v909 = vpop.xlane.xlu0 %908
    %v910 = vrcp.pop %v909
    %v911 = vmul.f32 %v906, %v910
    %912 = vrot.lane.b32.xlu0 %v144, 64
    %v913 = vpop.permute.xlu0 %912
    %v916 = vsel %vm150, %v911, 0
    %918 = vmatprep.subr.mxu0 0.0
    %919 = vmatpush1.msra.mxu0 %v913
    %920 = vmatprep.subr.mxu0 0.0
    %921 = vmatpush1.msra.mxu0 0.0
    %922 = vmatprep.subr.mxu0 0.0
    %923 = vmatpush1.msra.mxu0 0.0
    %924 = vmatprep.subr.mxu0 0.0
    %925 = vmatpush1.msra.mxu0 0.0
    %926 = vmatprep.subr.mxu0 0.0
    %927 = vmatpush1.msra.mxu0 0.0
    %928 = vmatprep.subr.mxu0 0.0
    %929 = vmatpush1.msra.mxu0 0.0
    %930 = vmatprep.subr.mxu0 0.0
    %931 = vmatpush1.msra.mxu0 0.0
    %932 = vmatprep.subr.mxu0 0.0
    %933 = vmatpush1.msra.mxu0 0.0
    %934 = vmatprep.subr.mxu0 0.0
    %935 = vmatpush1.msra.mxu0 0.0
    %936 = vmatprep.subr.mxu0 0.0
    %937 = vmatpush1.msra.mxu0 0.0
    %938 = vmatprep.subr.mxu0 0.0
    %939 = vmatpush1.msra.mxu0 0.0
    %940 = vmatprep.subr.mxu0 0.0
    %941 = vmatpush1.msra.mxu0 0.0
    %942 = vmatprep.subr.mxu0 0.0
    %943 = vmatpush1.msra.mxu0 0.0
    %944 = vmatprep.subr.mxu0 0.0
    %945 = vmatpush1.msra.mxu0 0.0
    %946 = vmatprep.subr.mxu0 0.0
    %947 = vmatpush1.msra.mxu0 0.0
    %948 = vmatprep.subr.mxu0 0.0
    %949 = vmatpush1.msra.mxu0 0.0
    %950 = vmatprep.subr.mxu0 0.0
    %951 = vmatpush1.msra.mxu0 0.0
    %952 = vmatprep.subr.mxu0 0.0
    %953 = vmatpush1.msra.mxu0 0.0
    %954 = vmatprep.subr.mxu0 0.0
    %955 = vmatpush1.msra.mxu0 0.0
    %956 = vmatprep.subr.mxu0 0.0
    %957 = vmatpush1.msra.mxu0 0.0
    %958 = vmatprep.subr.mxu0 0.0
    %959 = vmatpush1.msra.mxu0 0.0
    %960 = vmatprep.subr.mxu0 0.0
    %961 = vmatpush1.msra.mxu0 0.0
    %962 = vmatprep.subr.mxu0 0.0
    %963 = vmatpush1.msra.mxu0 0.0
    %964 = vmatprep.subr.mxu0 0.0
    %965 = vmatpush1.msra.mxu0 0.0
    %966 = vmatprep.subr.mxu0 0.0
    %967 = vmatpush1.msra.mxu0 0.0
    %968 = vmatprep.subr.mxu0 0.0
    %969 = vmatpush1.msra.mxu0 0.0
    %970 = vmatprep.subr.mxu0 0.0
    %971 = vmatpush1.msra.mxu0 0.0
    %972 = vmatprep.subr.mxu0 0.0
    %973 = vmatpush1.msra.mxu0 0.0
    %974 = vmatprep.subr.mxu0 0.0
    %975 = vmatpush1.msra.mxu0 0.0
    %976 = vmatprep.subr.mxu0 0.0
    %977 = vmatpush1.msra.mxu0 0.0
    %978 = vmatprep.subr.mxu0 0.0
    %979 = vmatpush1.msra.mxu0 0.0
    %980 = vmatprep.subr.mxu0 0.0
    %981 = vmatpush1.msra.mxu0 0.0
    %982 = vmatprep.mubr.f32.mxu0 0.0
    %983 = vmatmul.mubr.f32.gmra.mrb[0].mxu0 %v916
    %v984 = vpop.f32.mrb[0].mxu0
    %v985 = vadd.f32 0.0, %v984
    %v986 = vpop.f32.mrb[0].mxu0
    %987 = vdwg.mxu0
    %988 = vrot.lane.b32.xlu0 %v144, 120
    %v989 = vpop.permute.xlu0 %988
    %990 = vrot.lane.b32.xlu0 %v144, 88
    %v991 = vpop.permute.xlu0 %990
    %v992 = vsel %vm150, %v989, 0
    %v994 = vsel %vm150, %v991, 0
    %996 = vmatprep.subr.mxu0 0.0
    %997 = vmatpush1.xpose.msra.mxu0 %v994
    %998 = vmatprep.subr.mxu0 0.0
    %999 = vmatpush1.xpose.msra.mxu0 0.0
    %1000 = vmatprep.subr.mxu0 0.0
    %1001 = vmatpush1.xpose.msra.mxu0 0.0
    %1002 = vmatprep.subr.mxu0 0.0
    %1003 = vmatpush1.xpose.msra.mxu0 0.0
    %1004 = vmatprep.subr.mxu0 0.0
    %1005 = vmatpush1.xpose.msra.mxu0 0.0
    %1006 = vmatprep.subr.mxu0 0.0
    %1007 = vmatpush1.xpose.msra.mxu0 0.0
    %1008 = vmatprep.subr.mxu0 0.0
    %1009 = vmatpush1.xpose.msra.mxu0 0.0
    %1010 = vmatprep.subr.mxu0 0.0
    %1011 = vmatpush1.xpose.msra.mxu0 0.0
    %1012 = vmatprep.subr.mxu0 0.0
    %1013 = vmatpush1.xpose.msra.mxu0 0.0
    %1014 = vmatprep.subr.mxu0 0.0
    %1015 = vmatpush1.xpose.msra.mxu0 0.0
    %1016 = vmatprep.subr.mxu0 0.0
    %1017 = vmatpush1.xpose.msra.mxu0 0.0
    %1018 = vmatprep.subr.mxu0 0.0
    %1019 = vmatpush1.xpose.msra.mxu0 0.0
    %1020 = vmatprep.subr.mxu0 0.0
    %1021 = vmatpush1.xpose.msra.mxu0 0.0
    %1022 = vmatprep.subr.mxu0 0.0
    %1023 = vmatpush1.xpose.msra.mxu0 0.0
    %1024 = vmatprep.subr.mxu0 0.0
    %1025 = vmatpush1.xpose.msra.mxu0 0.0
    %1026 = vmatprep.subr.mxu0 0.0
    %1027 = vmatpush1.xpose.msra.mxu0 0.0
    %1028 = vmatprep.subr.mxu0 0.0
    %1029 = vmatpush1.xpose.msra.mxu0 0.0
    %1030 = vmatprep.subr.mxu0 0.0
    %1031 = vmatpush1.xpose.msra.mxu0 0.0
    %1032 = vmatprep.subr.mxu0 0.0
    %1033 = vmatpush1.xpose.msra.mxu0 0.0
    %1034 = vmatprep.subr.mxu0 0.0
    %1035 = vmatpush1.xpose.msra.mxu0 0.0
    %1036 = vmatprep.subr.mxu0 0.0
    %1037 = vmatpush1.xpose.msra.mxu0 0.0
    %1038 = vmatprep.subr.mxu0 0.0
    %1039 = vmatpush1.xpose.msra.mxu0 0.0
    %1040 = vmatprep.subr.mxu0 0.0
    %1041 = vmatpush1.xpose.msra.mxu0 0.0
    %1042 = vmatprep.subr.mxu0 0.0
    %1043 = vmatpush1.xpose.msra.mxu0 0.0
    %1044 = vmatprep.subr.mxu0 0.0
    %1045 = vmatpush1.xpose.msra.mxu0 0.0
    %1046 = vmatprep.subr.mxu0 0.0
    %1047 = vmatpush1.xpose.msra.mxu0 0.0
    %1048 = vmatprep.subr.mxu0 0.0
    %1049 = vmatpush1.xpose.msra.mxu0 0.0
    %1050 = vmatprep.subr.mxu0 0.0
    %1051 = vmatpush1.xpose.msra.mxu0 0.0
    %1052 = vmatprep.subr.mxu0 0.0
    %1053 = vmatpush1.xpose.msra.mxu0 0.0
    %1054 = vmatprep.subr.mxu0 0.0
    %1055 = vmatpush1.xpose.msra.mxu0 0.0
    %1056 = vmatprep.subr.mxu0 0.0
    %1057 = vmatpush1.xpose.msra.mxu0 0.0
    %1058 = vmatprep.subr.mxu0 0.0
    %1059 = vmatpush1.xpose.msra.mxu0 0.0
    %1060 = vmatprep.mubr.f32.mxu0 0.0
    %1061 = vmatmul.mubr.f32.gmra.mrb[0].mxu0 %v992
    %v1062 = vpop.f32.mrb[0].mxu0
    %v1063 = vadd.f32 0.0, %v1062
    %v1064 = vpop.f32.mrb[0].mxu0
    %1065 = vdwg.mxu0
    %v1066 = vsel %vm150, %v1063, -inf
    %1067 = vmax.xlane.f32.xlu0 %v1066
    %v1068 = vpop.xlane.xlu0 %1067
    %v1069 = vsub.f32 %v1063, %v1068
    %v1070 = vmul.f32 %v1069, 1.442695
    %v1071 = vpow.pop %v1070
    %v1072 = vsel %vm150, %v1071, 0.0
    %1073 = vadd.xlane.f32.xlu0 %v1072
    %v1074 = vpop.xlane.xlu0 %1073
    %v1075 = vrcp.pop %v1074
    %v1076 = vmul.f32 %v1071, %v1075
    %1077 = vrot.lane.b32.xlu0 %v144, 56
    %v1078 = vpop.permute.xlu0 %1077
    %v1081 = vsel %vm150, %v1076, 0
    %1083 = vmatprep.subr.mxu0 0.0
    %1084 = vmatpush1.msra.mxu0 %v1078
    %1085 = vmatprep.subr.mxu0 0.0
    %1086 = vmatpush1.msra.mxu0 0.0
    %1087 = vmatprep.subr.mxu0 0.0
    %1088 = vmatpush1.msra.mxu0 0.0
    %1089 = vmatprep.subr.mxu0 0.0
    %1090 = vmatpush1.msra.mxu0 0.0
    %1091 = vmatprep.subr.mxu0 0.0
    %1092 = vmatpush1.msra.mxu0 0.0
    %1093 = vmatprep.subr.mxu0 0.0
    %1094 = vmatpush1.msra.mxu0 0.0
    %1095 = vmatprep.subr.mxu0 0.0
    %1096 = vmatpush1.msra.mxu0 0.0
    %1097 = vmatprep.subr.mxu0 0.0
    %1098 = vmatpush1.msra.mxu0 0.0
    %1099 = vmatprep.subr.mxu0 0.0
    %1100 = vmatpush1.msra.mxu0 0.0
    %1101 = vmatprep.subr.mxu0 0.0
    %1102 = vmatpush1.msra.mxu0 0.0
    %1103 = vmatprep.subr.mxu0 0.0
    %1104 = vmatpush1.msra.mxu0 0.0
    %1105 = vmatprep.subr.mxu0 0.0
    %1106 = vmatpush1.msra.mxu0 0.0
    %1107 = vmatprep.subr.mxu0 0.0
    %1108 = vmatpush1.msra.mxu0 0.0
    %1109 = vmatprep.subr.mxu0 0.0
    %1110 = vmatpush1.msra.mxu0 0.0
    %1111 = vmatprep.subr.mxu0 0.0
    %1112 = vmatpush1.msra.mxu0 0.0
    %1113 = vmatprep.subr.mxu0 0.0
    %1114 = vmatpush1.msra.mxu0 0.0
    %1115 = vmatprep.subr.mxu0 0.0
    %1116 = vmatpush1.msra.mxu0 0.0
    %1117 = vmatprep.subr.mxu0 0.0
    %1118 = vmatpush1.msra.mxu0 0.0
    %1119 = vmatprep.subr.mxu0 0.0
    %1120 = vmatpush1.msra.mxu0 0.0
    %1121 = vmatprep.subr.mxu0 0.0
    %1122 = vmatpush1.msra.mxu0 0.0
    %1123 = vmatprep.subr.mxu0 0.0
    %1124 = vmatpush1.msra.mxu0 0.0
    %1125 = vmatprep.subr.mxu0 0.0
    %1126 = vmatpush1.msra.mxu0 0.0
    %1127 = vmatprep.subr.mxu0 0.0
    %1128 = vmatpush1.msra.mxu0 0.0
    %1129 = vmatprep.subr.mxu0 0.0
    %1130 = vmatpush1.msra.mxu0 0.0
    %1131 = vmatprep.subr.mxu0 0.0
    %1132 = vmatpush1.msra.mxu0 0.0
    %1133 = vmatprep.subr.mxu0 0.0
    %1134 = vmatpush1.msra.mxu0 0.0
    %1135 = vmatprep.subr.mxu0 0.0
    %1136 = vmatpush1.msra.mxu0 0.0
    %1137 = vmatprep.subr.mxu0 0.0
    %1138 = vmatpush1.msra.mxu0 0.0
    %1139 = vmatprep.subr.mxu0 0.0
    %1140 = vmatpush1.msra.mxu0 0.0
    %1141 = vmatprep.subr.mxu0 0.0
    %1142 = vmatpush1.msra.mxu0 0.0
    %1143 = vmatprep.subr.mxu0 0.0
    %1144 = vmatpush1.msra.mxu0 0.0
    %1145 = vmatprep.subr.mxu0 0.0
    %1146 = vmatpush1.msra.mxu0 0.0
    %1147 = vmatprep.mubr.f32.mxu0 0.0
    %1148 = vmatmul.mubr.f32.gmra.mrb[0].mxu0 %v1081
    %v1149 = vpop.f32.mrb[0].mxu0
    %v1150 = vadd.f32 0.0, %v1149
    %v1151 = vpop.f32.mrb[0].mxu0
    %1152 = vdwg.mxu0
    %1153 = vrot.lane.b32.xlu0 %v144, 112
    %v1154 = vpop.permute.xlu0 %1153
    %1155 = vrot.lane.b32.xlu0 %v144, 80
    %v1156 = vpop.permute.xlu0 %1155
    %v1157 = vsel %vm150, %v1154, 0
    %v1159 = vsel %vm150, %v1156, 0
    %1161 = vmatprep.subr.mxu0 0.0
    %1162 = vmatpush1.xpose.msra.mxu0 %v1159
    %1163 = vmatprep.subr.mxu0 0.0
    %1164 = vmatpush1.xpose.msra.mxu0 0.0
    %1165 = vmatprep.subr.mxu0 0.0
    %1166 = vmatpush1.xpose.msra.mxu0 0.0
    %1167 = vmatprep.subr.mxu0 0.0
    %1168 = vmatpush1.xpose.msra.mxu0 0.0
    %1169 = vmatprep.subr.mxu0 0.0
    %1170 = vmatpush1.xpose.msra.mxu0 0.0
    %1171 = vmatprep.subr.mxu0 0.0
    %1172 = vmatpush1.xpose.msra.mxu0 0.0
    %1173 = vmatprep.subr.mxu0 0.0
    %1174 = vmatpush1.xpose.msra.mxu0 0.0
    %1175 = vmatprep.subr.mxu0 0.0
    %1176 = vmatpush1.xpose.msra.mxu0 0.0
    %1177 = vmatprep.subr.mxu0 0.0
    %1178 = vmatpush1.xpose.msra.mxu0 0.0
    %1179 = vmatprep.subr.mxu0 0.0
    %1180 = vmatpush1.xpose.msra.mxu0 0.0
    %1181 = vmatprep.subr.mxu0 0.0
    %1182 = vmatpush1.xpose.msra.mxu0 0.0
    %1183 = vmatprep.subr.mxu0 0.0
    %1184 = vmatpush1.xpose.msra.mxu0 0.0
    %1185 = vmatprep.subr.mxu0 0.0
    %1186 = vmatpush1.xpose.msra.mxu0 0.0
    %1187 = vmatprep.subr.mxu0 0.0
    %1188 = vmatpush1.xpose.msra.mxu0 0.0
    %1189 = vmatprep.subr.mxu0 0.0
    %1190 = vmatpush1.xpose.msra.mxu0 0.0
    %1191 = vmatprep.subr.mxu0 0.0
    %1192 = vmatpush1.xpose.msra.mxu0 0.0
    %1193 = vmatprep.subr.mxu0 0.0
    %1194 = vmatpush1.xpose.msra.mxu0 0.0
    %1195 = vmatprep.subr.mxu0 0.0
    %1196 = vmatpush1.xpose.msra.mxu0 0.0
    %1197 = vmatprep.subr.mxu0 0.0
    %1198 = vmatpush1.xpose.msra.mxu0 0.0
    %1199 = vmatprep.subr.mxu0 0.0
    %1200 = vmatpush1.xpose.msra.mxu0 0.0
    %1201 = vmatprep.subr.mxu0 0.0
    %1202 = vmatpush1.xpose.msra.mxu0 0.0
    %1203 = vmatprep.subr.mxu0 0.0
    %1204 = vmatpush1.xpose.msra.mxu0 0.0
    %1205 = vmatprep.subr.mxu0 0.0
    %1206 = vmatpush1.xpose.msra.mxu0 0.0
    %1207 = vmatprep.subr.mxu0 0.0
    %1208 = vmatpush1.xpose.msra.mxu0 0.0
    %1209 = vmatprep.subr.mxu0 0.0
    %1210 = vmatpush1.xpose.msra.mxu0 0.0
    %1211 = vmatprep.subr.mxu0 0.0
    %1212 = vmatpush1.xpose.msra.mxu0 0.0
    %1213 = vmatprep.subr.mxu0 0.0
    %1214 = vmatpush1.xpose.msra.mxu0 0.0
    %1215 = vmatprep.subr.mxu0 0.0
    %1216 = vmatpush1.xpose.msra.mxu0 0.0
    %1217 = vmatprep.subr.mxu0 0.0
    %1218 = vmatpush1.xpose.msra.mxu0 0.0
    %1219 = vmatprep.subr.mxu0 0.0
    %1220 = vmatpush1.xpose.msra.mxu0 0.0
    %1221 = vmatprep.subr.mxu0 0.0
    %1222 = vmatpush1.xpose.msra.mxu0 0.0
    %1223 = vmatprep.subr.mxu0 0.0
    %1224 = vmatpush1.xpose.msra.mxu0 0.0
    %1225 = vmatprep.mubr.f32.mxu0 0.0
    %1226 = vmatmul.mubr.f32.gmra.mrb[0].mxu0 %v1157
    %v1227 = vpop.f32.mrb[0].mxu0
    %v1228 = vadd.f32 0.0, %v1227
    %v1229 = vpop.f32.mrb[0].mxu0
    %1230 = vdwg.mxu0
    %v1231 = vsel %vm150, %v1228, -inf
    %1232 = vmax.xlane.f32.xlu0 %v1231
    %v1233 = vpop.xlane.xlu0 %1232
    %v1234 = vsub.f32 %v1228, %v1233
    %v1235 = vmul.f32 %v1234, 1.442695
    %v1236 = vpow.pop %v1235
    %v1237 = vsel %vm150, %v1236, 0.0
    %1238 = vadd.xlane.f32.xlu0 %v1237
    %v1239 = vpop.xlane.xlu0 %1238
    %v1240 = vrcp.pop %v1239
    %v1241 = vmul.f32 %v1236, %v1240
    %1242 = vrot.lane.b32.xlu0 %v144, 48
    %v1243 = vpop.permute.xlu0 %1242
    %v1246 = vsel %vm150, %v1241, 0
    %1248 = vmatprep.subr.mxu0 0.0
    %1249 = vmatpush1.msra.mxu0 %v1243
    %1250 = vmatprep.subr.mxu0 0.0
    %1251 = vmatpush1.msra.mxu0 0.0
    %1252 = vmatprep.subr.mxu0 0.0
    %1253 = vmatpush1.msra.mxu0 0.0
    %1254 = vmatprep.subr.mxu0 0.0
    %1255 = vmatpush1.msra.mxu0 0.0
    %1256 = vmatprep.subr.mxu0 0.0
    %1257 = vmatpush1.msra.mxu0 0.0
    %1258 = vmatprep.subr.mxu0 0.0
    %1259 = vmatpush1.msra.mxu0 0.0
    %1260 = vmatprep.subr.mxu0 0.0
    %1261 = vmatpush1.msra.mxu0 0.0
    %1262 = vmatprep.subr.mxu0 0.0
    %1263 = vmatpush1.msra.mxu0 0.0
    %1264 = vmatprep.subr.mxu0 0.0
    %1265 = vmatpush1.msra.mxu0 0.0
    %1266 = vmatprep.subr.mxu0 0.0
    %1267 = vmatpush1.msra.mxu0 0.0
    %1268 = vmatprep.subr.mxu0 0.0
    %1269 = vmatpush1.msra.mxu0 0.0
    %1270 = vmatprep.subr.mxu0 0.0
    %1271 = vmatpush1.msra.mxu0 0.0
    %1272 = vmatprep.subr.mxu0 0.0
    %1273 = vmatpush1.msra.mxu0 0.0
    %1274 = vmatprep.subr.mxu0 0.0
    %1275 = vmatpush1.msra.mxu0 0.0
    %1276 = vmatprep.subr.mxu0 0.0
    %1277 = vmatpush1.msra.mxu0 0.0
    %1278 = vmatprep.subr.mxu0 0.0
    %1279 = vmatpush1.msra.mxu0 0.0
    %1280 = vmatprep.subr.mxu0 0.0
    %1281 = vmatpush1.msra.mxu0 0.0
    %1282 = vmatprep.subr.mxu0 0.0
    %1283 = vmatpush1.msra.mxu0 0.0
    %1284 = vmatprep.subr.mxu0 0.0
    %1285 = vmatpush1.msra.mxu0 0.0
    %1286 = vmatprep.subr.mxu0 0.0
    %1287 = vmatpush1.msra.mxu0 0.0
    %1288 = vmatprep.subr.mxu0 0.0
    %1289 = vmatpush1.msra.mxu0 0.0
    %1290 = vmatprep.subr.mxu0 0.0
    %1291 = vmatpush1.msra.mxu0 0.0
    %1292 = vmatprep.subr.mxu0 0.0
    %1293 = vmatpush1.msra.mxu0 0.0
    %1294 = vmatprep.subr.mxu0 0.0
    %1295 = vmatpush1.msra.mxu0 0.0
    %1296 = vmatprep.subr.mxu0 0.0
    %1297 = vmatpush1.msra.mxu0 0.0
    %1298 = vmatprep.subr.mxu0 0.0
    %1299 = vmatpush1.msra.mxu0 0.0
    %1300 = vmatprep.subr.mxu0 0.0
    %1301 = vmatpush1.msra.mxu0 0.0
    %1302 = vmatprep.subr.mxu0 0.0
    %1303 = vmatpush1.msra.mxu0 0.0
    %1304 = vmatprep.subr.mxu0 0.0
    %1305 = vmatpush1.msra.mxu0 0.0
    %1306 = vmatprep.subr.mxu0 0.0
    %1307 = vmatpush1.msra.mxu0 0.0
    %1308 = vmatprep.subr.mxu0 0.0
    %1309 = vmatpush1.msra.mxu0 0.0
    %1310 = vmatprep.subr.mxu0 0.0
    %1311 = vmatpush1.msra.mxu0 0.0
    %1312 = vmatprep.mubr.f32.mxu0 0.0
    %1313 = vmatmul.mubr.f32.gmra.mrb[0].mxu0 %v1246
    %v1314 = vpop.f32.mrb[0].mxu0
    %v1315 = vadd.f32 0.0, %v1314
    %v1316 = vpop.f32.mrb[0].mxu0
    %1317 = vdwg.mxu0
    %1318 = vrot.lane.b32.xlu0 %v144, 104
    %v1319 = vpop.permute.xlu0 %1318
    %1320 = vrot.lane.b32.xlu0 %v144, 72
    %v1321 = vpop.permute.xlu0 %1320
    %v1322 = vsel %vm150, %v1319, 0
    %v1324 = vsel %vm150, %v1321, 0
    %1326 = vmatprep.subr.mxu0 0.0
    %1327 = vmatpush1.xpose.msra.mxu0 %v1324
    %1328 = vmatprep.subr.mxu0 0.0
    %1329 = vmatpush1.xpose.msra.mxu0 0.0
    %1330 = vmatprep.subr.mxu0 0.0
    %1331 = vmatpush1.xpose.msra.mxu0 0.0
    %1332 = vmatprep.subr.mxu0 0.0
    %1333 = vmatpush1.xpose.msra.mxu0 0.0
    %1334 = vmatprep.subr.mxu0 0.0
    %1335 = vmatpush1.xpose.msra.mxu0 0.0
    %1336 = vmatprep.subr.mxu0 0.0
    %1337 = vmatpush1.xpose.msra.mxu0 0.0
    %1338 = vmatprep.subr.mxu0 0.0
    %1339 = vmatpush1.xpose.msra.mxu0 0.0
    %1340 = vmatprep.subr.mxu0 0.0
    %1341 = vmatpush1.xpose.msra.mxu0 0.0
    %1342 = vmatprep.subr.mxu0 0.0
    %1343 = vmatpush1.xpose.msra.mxu0 0.0
    %1344 = vmatprep.subr.mxu0 0.0
    %1345 = vmatpush1.xpose.msra.mxu0 0.0
    %1346 = vmatprep.subr.mxu0 0.0
    %1347 = vmatpush1.xpose.msra.mxu0 0.0
    %1348 = vmatprep.subr.mxu0 0.0
    %1349 = vmatpush1.xpose.msra.mxu0 0.0
    %1350 = vmatprep.subr.mxu0 0.0
    %1351 = vmatpush1.xpose.msra.mxu0 0.0
    %1352 = vmatprep.subr.mxu0 0.0
    %1353 = vmatpush1.xpose.msra.mxu0 0.0
    %1354 = vmatprep.subr.mxu0 0.0
    %1355 = vmatpush1.xpose.msra.mxu0 0.0
    %1356 = vmatprep.subr.mxu0 0.0
    %1357 = vmatpush1.xpose.msra.mxu0 0.0
    %1358 = vmatprep.subr.mxu0 0.0
    %1359 = vmatpush1.xpose.msra.mxu0 0.0
    %1360 = vmatprep.subr.mxu0 0.0
    %1361 = vmatpush1.xpose.msra.mxu0 0.0
    %1362 = vmatprep.subr.mxu0 0.0
    %1363 = vmatpush1.xpose.msra.mxu0 0.0
    %1364 = vmatprep.subr.mxu0 0.0
    %1365 = vmatpush1.xpose.msra.mxu0 0.0
    %1366 = vmatprep.subr.mxu0 0.0
    %1367 = vmatpush1.xpose.msra.mxu0 0.0
    %1368 = vmatprep.subr.mxu0 0.0
    %1369 = vmatpush1.xpose.msra.mxu0 0.0
    %1370 = vmatprep.subr.mxu0 0.0
    %1371 = vmatpush1.xpose.msra.mxu0 0.0
    %1372 = vmatprep.subr.mxu0 0.0
    %1373 = vmatpush1.xpose.msra.mxu0 0.0
    %1374 = vmatprep.subr.mxu0 0.0
    %1375 = vmatpush1.xpose.msra.mxu0 0.0
    %1376 = vmatprep.subr.mxu0 0.0
    %1377 = vmatpush1.xpose.msra.mxu0 0.0
    %1378 = vmatprep.subr.mxu0 0.0
    %1379 = vmatpush1.xpose.msra.mxu0 0.0
    %1380 = vmatprep.subr.mxu0 0.0
    %1381 = vmatpush1.xpose.msra.mxu0 0.0
    %1382 = vmatprep.subr.mxu0 0.0
    %1383 = vmatpush1.xpose.msra.mxu0 0.0
    %1384 = vmatprep.subr.mxu0 0.0
    %1385 = vmatpush1.xpose.msra.mxu0 0.0
    %1386 = vmatprep.subr.mxu0 0.0
    %1387 = vmatpush1.xpose.msra.mxu0 0.0
    %1388 = vmatprep.subr.mxu0 0.0
    %1389 = vmatpush1.xpose.msra.mxu0 0.0
    %1390 = vmatprep.mubr.f32.mxu0 0.0
    %1391 = vmatmul.mubr.f32.gmra.mrb[0].mxu0 %v1322
    %v1392 = vpop.f32.mrb[0].mxu0
    %v1393 = vadd.f32 0.0, %v1392
    %v1394 = vpop.f32.mrb[0].mxu0
    %1395 = vdwg.mxu0
    %v1396 = vsel %vm150, %v1393, -inf
    %1397 = vmax.xlane.f32.xlu0 %v1396
    %v1398 = vpop.xlane.xlu0 %1397
    %v1399 = vsub.f32 %v1393, %v1398
    %v1400 = vmul.f32 %v1399, 1.442695
    %v1401 = vpow.pop %v1400
    %v1402 = vsel %vm150, %v1401, 0.0
    %1403 = vadd.xlane.f32.xlu0 %v1402
    %v1404 = vpop.xlane.xlu0 %1403
    %v1405 = vrcp.pop %v1404
    %v1406 = vmul.f32 %v1401, %v1405
    %1407 = vrot.lane.b32.xlu0 %v144, 40
    %v1408 = vpop.permute.xlu0 %1407
    %v1411 = vsel %vm150, %v1406, 0
    %1413 = vmatprep.subr.mxu0 0.0
    %1414 = vmatpush1.msra.mxu0 %v1408
    %1415 = vmatprep.subr.mxu0 0.0
    %1416 = vmatpush1.msra.mxu0 0.0
    %1417 = vmatprep.subr.mxu0 0.0
    %1418 = vmatpush1.msra.mxu0 0.0
    %1419 = vmatprep.subr.mxu0 0.0
    %1420 = vmatpush1.msra.mxu0 0.0
    %1421 = vmatprep.subr.mxu0 0.0
    %1422 = vmatpush1.msra.mxu0 0.0
    %1423 = vmatprep.subr.mxu0 0.0
    %1424 = vmatpush1.msra.mxu0 0.0
    %1425 = vmatprep.subr.mxu0 0.0
    %1426 = vmatpush1.msra.mxu0 0.0
    %1427 = vmatprep.subr.mxu0 0.0
    %1428 = vmatpush1.msra.mxu0 0.0
    %1429 = vmatprep.subr.mxu0 0.0
    %1430 = vmatpush1.msra.mxu0 0.0
    %1431 = vmatprep.subr.mxu0 0.0
    %1432 = vmatpush1.msra.mxu0 0.0
    %1433 = vmatprep.subr.mxu0 0.0
    %1434 = vmatpush1.msra.mxu0 0.0
    %1435 = vmatprep.subr.mxu0 0.0
    %1436 = vmatpush1.msra.mxu0 0.0
    %1437 = vmatprep.subr.mxu0 0.0
    %1438 = vmatpush1.msra.mxu0 0.0
    %1439 = vmatprep.subr.mxu0 0.0
    %1440 = vmatpush1.msra.mxu0 0.0
    %1441 = vmatprep.subr.mxu0 0.0
    %1442 = vmatpush1.msra.mxu0 0.0
    %1443 = vmatprep.subr.mxu0 0.0
    %1444 = vmatpush1.msra.mxu0 0.0
    %1445 = vmatprep.subr.mxu0 0.0
    %1446 = vmatpush1.msra.mxu0 0.0
    %1447 = vmatprep.subr.mxu0 0.0
    %1448 = vmatpush1.msra.mxu0 0.0
    %1449 = vmatprep.subr.mxu0 0.0
    %1450 = vmatpush1.msra.mxu0 0.0
    %1451 = vmatprep.subr.mxu0 0.0
    %1452 = vmatpush1.msra.mxu0 0.0
    %1453 = vmatprep.subr.mxu0 0.0
    %1454 = vmatpush1.msra.mxu0 0.0
    %1455 = vmatprep.subr.mxu0 0.0
    %1456 = vmatpush1.msra.mxu0 0.0
    %1457 = vmatprep.subr.mxu0 0.0
    %1458 = vmatpush1.msra.mxu0 0.0
    %1459 = vmatprep.subr.mxu0 0.0
    %1460 = vmatpush1.msra.mxu0 0.0
    %1461 = vmatprep.subr.mxu0 0.0
    %1462 = vmatpush1.msra.mxu0 0.0
    %1463 = vmatprep.subr.mxu0 0.0
    %1464 = vmatpush1.msra.mxu0 0.0
    %1465 = vmatprep.subr.mxu0 0.0
    %1466 = vmatpush1.msra.mxu0 0.0
    %1467 = vmatprep.subr.mxu0 0.0
    %1468 = vmatpush1.msra.mxu0 0.0
    %1469 = vmatprep.subr.mxu0 0.0
    %1470 = vmatpush1.msra.mxu0 0.0
    %1471 = vmatprep.subr.mxu0 0.0
    %1472 = vmatpush1.msra.mxu0 0.0
    %1473 = vmatprep.subr.mxu0 0.0
    %1474 = vmatpush1.msra.mxu0 0.0
    %1475 = vmatprep.subr.mxu0 0.0
    %1476 = vmatpush1.msra.mxu0 0.0
    %1477 = vmatprep.mubr.f32.mxu0 0.0
    %1478 = vmatmul.mubr.f32.gmra.mrb[0].mxu0 %v1411
    %v1479 = vpop.f32.mrb[0].mxu0
    %v1480 = vadd.f32 0.0, %v1479
    %v1481 = vpop.f32.mrb[0].mxu0
    %1482 = vdwg.mxu0
    %1484 = vrot.lane.b32.xlu0 %v1150, 8
    %v1485 = vpop.permute.xlu0 %1484
    %1488 = vrot.lane.b32.xlu0 %v1315, 16
    %v1489 = vpop.permute.xlu0 %1488
    %1492 = vrot.lane.b32.xlu0 %v1480, 24
    %v1493 = vpop.permute.xlu0 %1492
    %v1495 = vsel %vm150, %v985, %v1485
    %v1496 = vsel %vm820, %v1495, %v1489
    %v1497 = vsel %vm822, %v1496, %v1493
    %v1498 = vld [vmem:[#allocation7] sm:$0xff]
    %v1499 = vld [vmem:[#allocation7 + $0x8] sm:$0xff]
    %v1500 = vld [vmem:[#allocation7 + $0x10] sm:$0xff]
    %v1501 = vld [vmem:[#allocation7 + $0x18] sm:$0xff]
    %v1502 = vld [vmem:[%s3] sm:$0x1]
    %v1504 = vlaneseq
    %v1505 = vshrl.u32 %v1504, 7
    %v1506 = vsub.s32 0, %v1505
    %v1507 = vrot.slane %v1502, %v1506
    %v1510 = vsel %vm65, %v823, 0
    %v1513 = vsel %vm65, %v1497, 0
    %1515 = vmatprep.subr.mxu0 0.0
    %1516 = vmatpush1.msra.mxu0 %v1498
    %1517 = vmatprep.subr.mxu0 0.0
    %1518 = vmatpush1.msra.mxu0 %v1499
    %1519 = vmatprep.subr.mxu0 0.0
    %1520 = vmatpush1.msra.mxu0 %v1500
    %1521 = vmatprep.subr.mxu0 0.0
    %1522 = vmatpush1.msra.mxu0 %v1501
    %1523 = vmatprep.subr.mxu0 0.0
    %1524 = vmatpush1.msra.mxu0 0.0
    %1525 = vmatprep.subr.mxu0 0.0
    %1526 = vmatpush1.msra.mxu0 0.0
    %1527 = vmatprep.subr.mxu0 0.0
    %1528 = vmatpush1.msra.mxu0 0.0
    %1529 = vmatprep.subr.mxu0 0.0
    %1530 = vmatpush1.msra.mxu0 0.0
    %1531 = vmatprep.subr.mxu0 0.0
    %1532 = vmatpush1.msra.mxu0 0.0
    %1533 = vmatprep.subr.mxu0 0.0
    %1534 = vmatpush1.msra.mxu0 0.0
    %1535 = vmatprep.subr.mxu0 0.0
    %1536 = vmatpush1.msra.mxu0 0.0
    %1537 = vmatprep.subr.mxu0 0.0
    %1538 = vmatpush1.msra.mxu0 0.0
    %1539 = vmatprep.subr.mxu0 0.0
    %1540 = vmatpush1.msra.mxu0 0.0
    %1541 = vmatprep.subr.mxu0 0.0
    %1542 = vmatpush1.msra.mxu0 0.0
    %1543 = vmatprep.subr.mxu0 0.0
    %1544 = vmatpush1.msra.mxu0 0.0
    %1545 = vmatprep.subr.mxu0 0.0
    %1546 = vmatpush1.msra.mxu0 0.0
    %1547 = vmatprep.subr.mxu0 0.0
    %1548 = vmatpush1.msra.mxu0 0.0
    %1549 = vmatprep.subr.mxu0 0.0
    %1550 = vmatpush1.msra.mxu0 0.0
    %1551 = vmatprep.subr.mxu0 0.0
    %1552 = vmatpush1.msra.mxu0 0.0
    %1553 = vmatprep.subr.mxu0 0.0
    %1554 = vmatpush1.msra.mxu0 0.0
    %1555 = vmatprep.subr.mxu0 0.0
    %1556 = vmatpush1.msra.mxu0 0.0
    %1557 = vmatprep.subr.mxu0 0.0
    %1558 = vmatpush1.msra.mxu0 0.0
    %1559 = vmatprep.subr.mxu0 0.0
    %1560 = vmatpush1.msra.mxu0 0.0
    %1561 = vmatprep.subr.mxu0 0.0
    %1562 = vmatpush1.msra.mxu0 0.0
    %1563 = vmatprep.subr.mxu0 0.0
    %1564 = vmatpush1.msra.mxu0 0.0
    %1565 = vmatprep.subr.mxu0 0.0
    %1566 = vmatpush1.msra.mxu0 0.0
    %1567 = vmatprep.subr.mxu0 0.0
    %1568 = vmatpush1.msra.mxu0 0.0
    %1569 = vmatprep.subr.mxu0 0.0
    %1570 = vmatpush1.msra.mxu0 0.0
    %1571 = vmatprep.subr.mxu0 0.0
    %1572 = vmatpush1.msra.mxu0 0.0
    %1573 = vmatprep.subr.mxu0 0.0
    %1574 = vmatpush1.msra.mxu0 0.0
    %1575 = vmatprep.subr.mxu0 0.0
    %1576 = vmatpush1.msra.mxu0 0.0
    %1577 = vmatprep.subr.mxu0 0.0
    %1578 = vmatpush1.msra.mxu0 0.0
    %1579 = vmatprep.mubr.f32.mxu0 0.0
    %1580 = vmatmul.mubr.f32.gmra.mrb[0].mxu0 %v1510
    %v1581 = vpop.f32.mrb[0].mxu0
    %v1582 = vadd.f32 %v1507, %v1581
    %v1583 = vpop.f32.mrb[0].mxu0
    %1584 = vmatprep.mubr.f32.mxu0 0.0
    %1585 = vmatmul.mubr.f32.gmra.mrb[0].mxu0 %v1513
    %v1586 = vpop.f32.mrb[0].mxu0
    %v1587 = vadd.f32 %v1507, %v1586
    %v1588 = vpop.f32.mrb[0].mxu0
    %1589 = vdwg.mxu0
    %1590 = vst.msk [vmem:[#allocation8] sm:$0xff] %vm65, %v1582
    %1591 = vst.msk [vmem:[#allocation8 + $0x8] sm:$0xff] %vm65, %v1587
    // Predicated region
    $region30: #{self_attention_pallas.1} parent=1 // pred_check
      _
    $region31: #{self_attention_pallas.1} parent=1 // pred_check_branch
      %1593 = sbr.rel (0) target = $region33
    $region32: #{self_attention_pallas.1} parent=1 // pred_region
      %s1595 = ssub.s32 256, 256
      %1596 = vsyncadd [#allocation4], %s1595
      %s1597 = sshll.u32 [#allocation8], 4
      %s1598 = int_to_ptr.vmem [resolvable:$true] %s1597
      %1603 = dma.vmem_to_hbm [thread:$0]  %s1598, 256, %s4, [#allocation4], 128, 128, 8
    $region33: #{self_attention_pallas.1} parent=1 // pred_fallthru
      _
    // Predicated region
    $region34: #{self_attention_pallas.1} parent=1 // pred_check
      _
    $region35: #{self_attention_pallas.1} parent=1 // pred_check_branch
      %1605 = sbr.rel (0) target = $region37
    $region36: #{self_attention_pallas.1} parent=1 // pred_region
      %1606 = dma.done [#allocation4], 256
    $region37: #{self_attention_pallas.1} parent=1 // pred_fallthru
      _
    %1607 = vsyncpa [#allocation3], 1
    %1608 = vsyncpa [#allocation6], 1
    %1609 = vsyncpa [#allocation4], 1

</llo_original>
